<compile_context>
chip_gen: v6e
topology: v6e:2x2x1
jax: 0.10.0
libtpu: 0.0.40
codegen_flags: <defaults>
</compile_context>

<pallas_src>
import functools

import jax
import jax.numpy as jnp
from jax import lax
from jax.experimental import pallas as pl
from jax.experimental.pallas import tpu as pltpu

LRELU_SLOPE = 0.1


def get_padding(kernel_size, dilation=1):
    # Symmetric "same" padding (odd kernel sizes only, as in ResBlock2).
    return int((kernel_size * dilation - dilation) / 2)


def _lrelu(x):
    # max(x, 0.1*x): 2 VPU ops (mul+max) instead of cmp+mul+select.
    return jnp.maximum(x, LRELU_SLOPE * x)


def _round_up(v, m):
    return ((v + m - 1) // m) * m


def _default_fuse_taps():
    # The fused (K*C)-deep contraction fills the 256-deep MXU on v6e/v7x; on
    # 128x128 MXUs (<= v5) the channel concat only adds vector-store traffic,
    # so accumulate 3 per-tap matmuls there instead.  Correct either way.
    try:
        kind = jax.devices()[0].device_kind.lower()
    except Exception:
        return True
    return not any(t in kind for t in ("v2", "v3", "v4", "v5"))


def resblock2_kernel(x_hbm, w1_ref, b1_ref, w2_ref, b2_ref, o_ref,
                     xbuf, sem, xt_ref, y1_ref,
                     *, tile_l, halo, p2, d1, d2, ksize, l_true, fuse_taps):
    """Fused 2-layer dilated-conv residual block on one (batch, time-tile).

    x_hbm : (B, l_pad + 2*halo, C) f32 in HBM (zero padded, channels-last)
    w*_ref: (K*C, C)   MXU-dtype VMEM   folded conv weights (tap-major rows)
    b*_ref: (1, C)     f32 VMEM
    o_ref : (tile_l, C) f32             output tile (batch dim squeezed)
    xbuf  : (2, tile_l + 2*halo, C) f32 VMEM   double-buffered input tile
    sem   : DMA semaphores (2,)
    xt_ref: (tile_l + 2*halo, C) MXU-dtype VMEM   staged leaky_relu activations
    y1_ref: (tile_l + 2*p2, C)  f32 VMEM          layer-1 output (+ halo rows)
    """
    TL, C = o_ref.shape
    TLH = xbuf.shape[1]                       # tile_l + 2*halo
    pad1 = (ksize // 2) * d1
    pad2 = (ksize // 2) * d2
    T1 = TL + 2 * p2                          # layer-1 rows produced

    b = pl.program_id(0)
    i = pl.program_id(1)
    n = pl.num_programs(1)
    slot = lax.rem(i, 2)

    def start_fetch(batch_idx, tile_idx, slot_idx):
        pltpu.make_async_copy(
            x_hbm.at[batch_idx, pl.ds(tile_idx * tile_l, TLH), :],
            xbuf.at[slot_idx],
            sem.at[slot_idx],
        ).start()

    @pl.when(i == 0)
    def _():
        start_fetch(b, 0, 0)                  # prime this batch row's pipeline

    @pl.when(i + 1 < n)
    def _():
        start_fetch(b, i + 1, 1 - slot)       # prefetch next tile

    # Wait for this tile's DMA (descriptor only needs matching shapes).
    pltpu.make_async_copy(
        x_hbm.at[0, pl.ds(0, TLH), :], xbuf.at[slot], sem.at[slot]
    ).wait()

    def conv(w_ref, rows, base, d):
        """rows outputs; tap k reads xt_ref rows [base+k*d, base+k*d+rows)."""
        if fuse_taps:
            stacked = jnp.concatenate(
                [xt_ref[base + k * d: base + k * d + rows, :]
                 for k in range(ksize)], axis=-1)            # (rows, K*C)
            return jnp.dot(stacked, w_ref[...],
                           preferred_element_type=jnp.float32)
        acc = None
        for k in range(ksize):
            part = jnp.dot(xt_ref[base + k * d: base + k * d + rows, :],
                           w_ref[k * C:(k + 1) * C, :],
                           preferred_element_type=jnp.float32)
            acc = part if acc is None else acc + part
        return acc

    xv = xbuf[slot]                           # (TLH, C) f32; rows = logical
                                              # positions [t0-halo, t0+TL+halo)

    # ---- layer 1 (dilation d1): produce T1 = TL + 2*p2 rows (layer-2 halo).
    start1 = halo - p2
    xt_ref[...] = _lrelu(xv).astype(xt_ref.dtype)
    y1_ref[...] = (conv(w1_ref, T1, start1 - pad1, d1) + b1_ref[...]
                   + xv[start1:start1 + T1, :])              # residual add

    # Zero rows outside the true sequence [0, l_true): reproduces PyTorch's
    # zero padding of the SECOND conv's input.  Only edge tiles pay for it.
    t0 = i * tile_l
    @pl.when(jnp.logical_or(t0 - p2 < 0, t0 + TL + p2 > l_true))
    def _():
        g = (t0 - p2) + lax.broadcasted_iota(jnp.int32, (T1, 1), 0)
        y1_ref[...] = jnp.where(jnp.logical_and(g >= 0, g < l_true),
                                y1_ref[...], 0.0)

    # ---- layer 2 (dilation d2): produce this tile's TL output rows.
    xt_ref[0:T1, :] = _lrelu(y1_ref[...]).astype(xt_ref.dtype)
    y2 = (conv(w2_ref, TL, p2 - pad2, d2) + b2_ref[...]
          + y1_ref[p2:p2 + TL, :])                           # residual add
    o_ref[...] = y2.astype(o_ref.dtype)


def resblock2_pallas(x_blc, w1, b1, w2, b2, *, dilations=(1, 3), ksize=3,
                     tile_l=512, mxu_dtype=jnp.bfloat16, fuse_taps=None):
    """x_blc: (B, L, C) f32; w*: (K, C_in, C_out) f32; b*: (C,) f32."""
    B, L, C = x_blc.shape
    d1, d2 = dilations
    pad1 = get_padding(ksize, d1)
    pad2 = get_padding(ksize, d2)
    # 2*p2 must be a multiple of 8 so T1 = tile_l + 2*p2 stays sublane-aligned.
    p2 = _round_up(max(pad2, 1), 4)
    # 2*halo must be a multiple of 16 so tlh = tile_l + 2*halo stays aligned
    # even for the bf16 (16-row packed) staging buffer.
    halo = _round_up(p2 + pad1, 8)

    tile_l = _round_up(max(16, min(tile_l, _round_up(L, 16))), 16)
    n_tiles = pl.cdiv(L, tile_l)
    l_pad = n_tiles * tile_l
    tlh = tile_l + 2 * halo
    t1 = tile_l + 2 * p2

    if fuse_taps is None:
        fuse_taps = _default_fuse_taps()

    # Zero-pad time once on the host: provides both the conv "same" zeros and
    # the halo rows the kernel DMAs.
    # TODO(synk): replace with in-kernel clamped halo DMA + edge-row memset to
    # drop this extra full read+write of x in HBM on long sequences.
    x_pad = jnp.pad(x_blc, ((0, 0), (halo, halo + l_pad - L), (0, 0)))

    # Fold the K taps into a single (K*C_in, C_out) matrix (tap-major rows),
    # cast to the MXU operand dtype (f32 accumulate stays in-kernel).
    w1_2d = w1.reshape(ksize * C, C).astype(mxu_dtype)
    w2_2d = w2.reshape(ksize * C, C).astype(mxu_dtype)
    b1_2d = b1.reshape(1, C).astype(jnp.float32)
    b2_2d = b2.reshape(1, C).astype(jnp.float32)

    kern = functools.partial(
        resblock2_kernel, tile_l=tile_l, halo=halo, p2=p2, d1=d1, d2=d2,
        ksize=ksize, l_true=L, fuse_taps=fuse_taps)

    flops = 2 * 2 * ksize * C * C * B * l_pad       # 2 layers of K-tap C->C conv
    bytes_accessed = (4 * B * (l_pad + 2 * halo) * C + 4 * B * l_pad * C
                      + 2 * 2 * ksize * C * C)

    itemsz = jnp.dtype(mxu_dtype).itemsize
    vmem_need = (4 * 2 * tlh * C                     # xbuf double buffer (f32)
                 + itemsz * tlh * C                  # staged activations
                 + 4 * t1 * C                        # layer-1 scratch
                 + 2 * 4 * tile_l * C                # output double buffer
                 + 2 * 2 * (itemsz * ksize * C * C + 4 * C)      # weights/bias
                 + 2 * (itemsz * t1 * ksize * C + 4 * t1 * C))   # matmul temps
    vmem_limit = int(min(64 * 1024 * 1024,
                         max(32 * 1024 * 1024, 2 * vmem_need)))

    out = pl.pallas_call(
        kern,
        out_shape=jax.ShapeDtypeStruct((B, l_pad, C), jnp.float32),
        grid_spec=pltpu.PrefetchScalarGridSpec(
            num_scalar_prefetch=0,
            grid=(B, n_tiles),
            in_specs=[
                pl.BlockSpec(memory_space=pl.ANY),               # x stays in HBM
                pl.BlockSpec((ksize * C, C), lambda b, i: (0, 0)),  # resident
                pl.BlockSpec((1, C), lambda b, i: (0, 0)),
                pl.BlockSpec((ksize * C, C), lambda b, i: (0, 0)),
                pl.BlockSpec((1, C), lambda b, i: (0, 0)),
            ],
            out_specs=pl.BlockSpec((None, tile_l, C), lambda b, i: (b, i, 0)),
            scratch_shapes=[
                pltpu.VMEM((2, tlh, C), jnp.float32),            # double buffer
                pltpu.SemaphoreType.DMA((2,)),
                pltpu.VMEM((tlh, C), mxu_dtype),                 # lrelu staging
                pltpu.VMEM((t1, C), jnp.float32),                # layer-1 out
            ],
        ),
        compiler_params=pltpu.CompilerParams(
            # Batch axis shards across TensorCores (v7x megacore); the tile
            # axis must stay sequential because of the cross-iteration
            # manual prefetch.
            dimension_semantics=("parallel", "arbitrary"),
            vmem_limit_bytes=vmem_limit,
        ),
        cost_estimate=pl.CostEstimate(
            flops=flops, transcendentals=0, bytes_accessed=bytes_accessed),
    )(x_pad, w1_2d, b1_2d, w2_2d, b2_2d)
    return out[:, :L, :]


# ---------- plain-JAX glue: parameter construction & references ----------

def fold_weight_norm(v, g):
    """weight_norm on Conv1d: norm over (in, kernel) dims per out-channel."""
    # v: (C_out, C_in, K), g: (C_out,)
    norm = jnp.sqrt(jnp.sum(v * v, axis=(1, 2), keepdims=True))
    return g[:, None, None] * v / norm


def ref_forward(x_ncl, weights, biases, dilations, cast=None):
    """Pure-JAX reference in PyTorch NCL layout via conv_general_dilated.

    cast=jnp.bfloat16 reproduces the kernel's bf16-operand / f32-accumulate
    matmul numerics (activations + weights rounded to bf16 before the conv).
    """
    x = x_ncl
    for w, b, d in zip(weights, biases, dilations):
        xt = _lrelu(x)
        if cast is not None:
            xt = xt.astype(cast).astype(jnp.float32)
            w = w.astype(cast).astype(jnp.float32)
        pad = get_padding(w.shape[-1], d)
        y = lax.conv_general_dilated(
            xt, w, window_strides=(1,), padding=[(pad, pad)],
            rhs_dilation=(d,), dimension_numbers=('NCH', 'OIH', 'NCH'),
            precision=lax.Precision.HIGHEST)
        x = y + b[None, :, None] + x
    return x


if __name__ == "__main__":
    # Small but lane-dense shapes: C multiple of 128; L not a multiple of the
    # time tile (exercises halo DMA, prefetch, edge masking, ragged tail).
    B, C, L = 2, 128, 197
    KS = 3
    DILATIONS = (1, 3)

    key = jax.random.PRNGKey(0)
    kx, kv1, kg1, kb1, kv2, kg2, kb2 = jax.random.split(key, 7)

    # Input in PyTorch NCL layout.
    x_ncl = jax.random.normal(kx, (B, C, L), dtype=jnp.float32)

    # Conv1d params (init_weights ~ N(0, 0.01)); weight_norm parametrization.
    v1 = 0.01 * jax.random.normal(kv1, (C, C, KS), dtype=jnp.float32)
    g1 = 1.0 + 0.01 * jax.random.normal(kg1, (C,), dtype=jnp.float32)
    b1 = 0.01 * jax.random.normal(kb1, (C,), dtype=jnp.float32)
    v2 = 0.01 * jax.random.normal(kv2, (C, C, KS), dtype=jnp.float32)
    g2 = 1.0 + 0.01 * jax.random.normal(kg2, (C,), dtype=jnp.float32)
    b2 = 0.01 * jax.random.normal(kb2, (C,), dtype=jnp.float32)

    w1 = fold_weight_norm(v1, g1)   # (C_out, C_in, K)
    w2 = fold_weight_norm(v2, g2)

    # Kernel-side layouts: channels-last activations, (K, C_in, C_out) weights.
    x_blc = jnp.transpose(x_ncl, (0, 2, 1))            # (B, L, C)
    w1_k = jnp.transpose(w1, (2, 1, 0))                # (K, C_in, C_out)
    w2_k = jnp.transpose(w2, (2, 1, 0))

    # References: exact bf16-operand match (validates indexing/halo/masking)
    # and full-f32 semantics (validates the bf16 numerics stay small).
    ref_f32 = ref_forward(x_ncl, [w1, w2], [b1, b2], DILATIONS)
    ref_b16 = ref_forward(x_ncl, [w1, w2], [b1, b2], DILATIONS,
                          cast=jnp.bfloat16)
    ref_f32, ref_b16 = jax.block_until_ready((ref_f32, ref_b16))

    # tile_l=128 keeps the test multi-tile at L=197 (production default: 512).
    for fuse in (True, False):      # exercise both the v6e/v7x and v5e paths
        out_blc = resblock2_pallas(x_blc, w1_k, b1, w2_k, b2,
                                   dilations=DILATIONS, ksize=KS,
                                   tile_l=128, fuse_taps=fuse)
        out_blc = jax.block_until_ready(out_blc)
        out_ncl = jnp.transpose(out_blc, (0, 2, 1))

        err_matched = float(jnp.max(jnp.abs(out_ncl - ref_b16)))
        assert jnp.allclose(out_ncl, ref_b16, atol=5e-3, rtol=5e-3), (
            fuse, err_matched)
        err_f32 = float(jnp.max(jnp.abs(out_ncl - ref_f32)))
        assert jnp.allclose(out_ncl, ref_f32, atol=1e-1, rtol=5e-2), (
            fuse, err_f32)

    print("KERNEL_OK")
</pallas_src>

<mosaic_0001>
module attributes {stable_mosaic.version = 11 : i64} {
  func.func @resblock2_kernel(%arg0: i32, %arg1: i32, %arg2: memref<2x272x128xf32, #tpu.memory_space<any>>, %arg3: memref<384x128xbf16, #tpu.memory_space<vmem>>, %arg4: memref<1x128xf32, #tpu.memory_space<vmem>>, %arg5: memref<384x128xbf16, #tpu.memory_space<vmem>>, %arg6: memref<1x128xf32, #tpu.memory_space<vmem>>, %arg7: memref<1x128x128xf32, #tpu.memory_space<vmem>>, %arg8: memref<2x144x128xf32, #tpu.memory_space<vmem>>, %arg9: memref<2x!tpu.dma_semaphore, #tpu.memory_space<semaphore_mem>>, %arg10: memref<144x128xbf16, #tpu.memory_space<vmem>>, %arg11: memref<136x128xf32, #tpu.memory_space<vmem>>) attributes {dimension_semantics = [#tpu.dimension_semantics<parallel>, #tpu.dimension_semantics<arbitrary>], iteration_bounds = array<i64: 2, 2>, scalar_prefetch = 0 : i64, scratch_operands = 4 : i64, tpu.core_type = #tpu.core_type<tc>, window_params = [{}, {pipeline_mode = #tpu.pipeline_mode<synchronous>, transform_indices = @transform_1, window_bounds = array<i64: 384, 128>}, {pipeline_mode = #tpu.pipeline_mode<synchronous>, transform_indices = @transform_2, window_bounds = array<i64: 1, 128>}, {pipeline_mode = #tpu.pipeline_mode<synchronous>, transform_indices = @transform_3, window_bounds = array<i64: 384, 128>}, {pipeline_mode = #tpu.pipeline_mode<synchronous>, transform_indices = @transform_4, window_bounds = array<i64: 1, 128>}, {transform_indices = @transform_5, window_bounds = array<i64: 1, 128, 128>}]} {
    %c2_i32 = arith.constant 2 : i32
    %0 = arith.remsi %arg1, %c2_i32 : i32
    %c0_i32 = arith.constant 0 : i32
    %1 = arith.cmpi eq, %arg1, %c0_i32 : i32
    %2 = arith.extui %1 : i1 to i32
    %c0_i32_0 = arith.constant 0 : i32
    %3 = arith.cmpi ne, %2, %c0_i32_0 : i32
    scf.if %3 {
      %c0_i32_44 = arith.constant 0 : i32
      %c0_i32_45 = arith.constant 0 : i32
      %c0_i32_46 = arith.constant 0 : i32
      %c0_i32_47 = arith.constant 0 : i32
      %63 = tpu.memref_slice %arg2[%arg0, %c0_i32_46, %c0_i32_47] : memref<2x272x128xf32, #tpu.memory_space<any>> -> memref<1x144x128xf32, #tpu.memory_space<any>>
      %64 = tpu.memref_squeeze %63 : memref<1x144x128xf32, #tpu.memory_space<any>> -> memref<144x128xf32, #tpu.memory_space<any>>
      %c0_i32_48 = arith.constant 0 : i32
      %c0_i32_49 = arith.constant 0 : i32
      %65 = tpu.memref_slice %arg8[%c0_i32_44, %c0_i32_48, %c0_i32_49] : memref<2x144x128xf32, #tpu.memory_space<vmem>> -> memref<1x144x128xf32, #tpu.memory_space<vmem>>
      %66 = tpu.memref_squeeze %65 : memref<1x144x128xf32, #tpu.memory_space<vmem>> -> memref<144x128xf32, #tpu.memory_space<vmem>>
      %67 = tpu.memref_slice %arg9[%c0_i32_45] : memref<2x!tpu.dma_semaphore, #tpu.memory_space<semaphore_mem>> -> memref<1x!tpu.dma_semaphore, #tpu.memory_space<semaphore_mem>>
      %68 = tpu.memref_squeeze %67 : memref<1x!tpu.dma_semaphore, #tpu.memory_space<semaphore_mem>> -> memref<!tpu.dma_semaphore, #tpu.memory_space<semaphore_mem>>
      tpu.enqueue_dma source(%64 : memref<144x128xf32, #tpu.memory_space<any>>) target(%66 : memref<144x128xf32, #tpu.memory_space<vmem>>) target_semaphore(%68 : memref<!tpu.dma_semaphore, #tpu.memory_space<semaphore_mem>>)
    } else {
    }
    %c1_i32 = arith.constant 1 : i32
    %4 = arith.addi %arg1, %c1_i32 : i32
    %c2_i32_1 = arith.constant 2 : i32
    %5 = arith.cmpi slt, %4, %c2_i32_1 : i32
    %6 = arith.extui %5 : i1 to i32
    %c0_i32_2 = arith.constant 0 : i32
    %7 = arith.cmpi ne, %6, %c0_i32_2 : i32
    scf.if %7 {
      %c1_i32_44 = arith.constant 1 : i32
      %63 = arith.addi %arg1, %c1_i32_44 : i32
      %c1_i32_45 = arith.constant 1 : i32
      %64 = arith.subi %c1_i32_45, %0 : i32
      %c128_i32_46 = arith.constant 128 : i32
      %65 = arith.muli %63, %c128_i32_46 : i32
      %c0_i32_47 = arith.constant 0 : i32
      %66 = tpu.memref_slice %arg2[%arg0, %65, %c0_i32_47] : memref<2x272x128xf32, #tpu.memory_space<any>> -> memref<1x144x128xf32, #tpu.memory_space<any>>
      %67 = tpu.memref_squeeze %66 : memref<1x144x128xf32, #tpu.memory_space<any>> -> memref<144x128xf32, #tpu.memory_space<any>>
      %c0_i32_48 = arith.constant 0 : i32
      %c0_i32_49 = arith.constant 0 : i32
      %68 = tpu.memref_slice %arg8[%64, %c0_i32_48, %c0_i32_49] : memref<2x144x128xf32, #tpu.memory_space<vmem>> -> memref<1x144x128xf32, #tpu.memory_space<vmem>>
      %69 = tpu.memref_squeeze %68 : memref<1x144x128xf32, #tpu.memory_space<vmem>> -> memref<144x128xf32, #tpu.memory_space<vmem>>
      %70 = tpu.memref_slice %arg9[%64] : memref<2x!tpu.dma_semaphore, #tpu.memory_space<semaphore_mem>> -> memref<1x!tpu.dma_semaphore, #tpu.memory_space<semaphore_mem>>
      %71 = tpu.memref_squeeze %70 : memref<1x!tpu.dma_semaphore, #tpu.memory_space<semaphore_mem>> -> memref<!tpu.dma_semaphore, #tpu.memory_space<semaphore_mem>>
      tpu.enqueue_dma source(%67 : memref<144x128xf32, #tpu.memory_space<any>>) target(%69 : memref<144x128xf32, #tpu.memory_space<vmem>>) target_semaphore(%71 : memref<!tpu.dma_semaphore, #tpu.memory_space<semaphore_mem>>)
    } else {
    }
    %c0_i32_3 = arith.constant 0 : i32
    %c0_i32_4 = arith.constant 0 : i32
    %c0_i32_5 = arith.constant 0 : i32
    %8 = tpu.memref_slice %arg2[%c0_i32_3, %c0_i32_4, %c0_i32_5] : memref<2x272x128xf32, #tpu.memory_space<any>> -> memref<1x144x128xf32, #tpu.memory_space<any>>
    %9 = tpu.memref_squeeze %8 : memref<1x144x128xf32, #tpu.memory_space<any>> -> memref<144x128xf32, #tpu.memory_space<any>>
    %c0_i32_6 = arith.constant 0 : i32
    %c0_i32_7 = arith.constant 0 : i32
    %10 = tpu.memref_slice %arg8[%0, %c0_i32_6, %c0_i32_7] : memref<2x144x128xf32, #tpu.memory_space<vmem>> -> memref<1x144x128xf32, #tpu.memory_space<vmem>>
    %11 = tpu.memref_squeeze %10 : memref<1x144x128xf32, #tpu.memory_space<vmem>> -> memref<144x128xf32, #tpu.memory_space<vmem>>
    %12 = tpu.memref_slice %arg9[%0] : memref<2x!tpu.dma_semaphore, #tpu.memory_space<semaphore_mem>> -> memref<1x!tpu.dma_semaphore, #tpu.memory_space<semaphore_mem>>
    %13 = tpu.memref_squeeze %12 : memref<1x!tpu.dma_semaphore, #tpu.memory_space<semaphore_mem>> -> memref<!tpu.dma_semaphore, #tpu.memory_space<semaphore_mem>>
    tpu.wait_dma2 semaphore(%13 : memref<!tpu.dma_semaphore, #tpu.memory_space<semaphore_mem>>) src(%9 : memref<144x128xf32, #tpu.memory_space<any>>) dst(%11 : memref<144x128xf32, #tpu.memory_space<vmem>>)
    %14 = arith.index_cast %0 : i32 to index
    %c0 = arith.constant 0 : index
    %c0_8 = arith.constant 0 : index
    %15 = vector.load %arg8[%14, %c0, %c0_8] : memref<2x144x128xf32, #tpu.memory_space<vmem>>, vector<1x144x128xf32>
    %16 = vector.shape_cast %15 : vector<1x144x128xf32> to vector<144x128xf32>
    %cst = arith.constant 1.000000e-01 : f32
    %17 = vector.broadcast %cst : f32 to vector<144x128xf32>
    %18 = arith.mulf %17, %16 : vector<144x128xf32>
    %19 = arith.maximumf %16, %18 : vector<144x128xf32>
    %20 = arith.truncf %19 : vector<144x128xf32> to vector<144x128xbf16>
    %c0_9 = arith.constant 0 : index
    %c0_10 = arith.constant 0 : index
    %21 = vector.load %arg10[%c0_9, %c0_10] : memref<144x128xbf16, #tpu.memory_space<vmem>>, vector<144x128xbf16>
    tpu.vector_store %arg10[%c0_9, %c0_10], %20 {strides = array<i32>} : memref<144x128xbf16, #tpu.memory_space<vmem>>, vector<144x128xbf16>,
    %c3 = arith.constant 3 : index
    %c0_11 = arith.constant 0 : index
    %22 = vector.load %arg10[%c3, %c0_11] : memref<144x128xbf16, #tpu.memory_space<vmem>>, vector<136x128xbf16>
    %c4 = arith.constant 4 : index
    %c0_12 = arith.constant 0 : index
    %23 = vector.load %arg10[%c4, %c0_12] : memref<144x128xbf16, #tpu.memory_space<vmem>>, vector<136x128xbf16>
    %c5 = arith.constant 5 : index
    %c0_13 = arith.constant 0 : index
    %24 = vector.load %arg10[%c5, %c0_13] : memref<144x128xbf16, #tpu.memory_space<vmem>>, vector<136x128xbf16>
    %25 = tpu.concatenate %22, %23, %24 in 1 : vector<136x128xbf16>, vector<136x128xbf16>, vector<136x128xbf16> -> vector<136x384xbf16>
    %c0_14 = arith.constant 0 : index
    %c0_15 = arith.constant 0 : index
    %26 = vector.load %arg3[%c0_14, %c0_15] : memref<384x128xbf16, #tpu.memory_space<vmem>>, vector<384x128xbf16>
    %cst_16 = arith.constant dense<0.000000e+00> : vector<136x128xf32>
    %27 = tpu.matmul %25, %26, %cst_16 {dimension_numbers = #tpu.dot_dimension_numbers<[1], [0], [0], [1], [0, 0, 1, 1], [], []>} : vector<136x384xbf16>, vector<384x128xbf16>, vector<136x128xf32> -> vector<136x128xf32>
    %c0_17 = arith.constant 0 : index
    %c0_18 = arith.constant 0 : index
    %28 = vector.load %arg4[%c0_17, %c0_18] : memref<1x128xf32, #tpu.memory_space<vmem>>, vector<1x128xf32>
    %29 = vector.broadcast %28 : vector<1x128xf32> to vector<136x128xf32>
    %30 = arith.addf %27, %29 : vector<136x128xf32>
    %31 = vector.extract_strided_slice %16 {offsets = [4, 0], sizes = [136, 128], strides = [1, 1]} : vector<144x128xf32> to vector<136x128xf32>
    %32 = arith.addf %30, %31 : vector<136x128xf32>
    %c0_19 = arith.constant 0 : index
    %c0_20 = arith.constant 0 : index
    %33 = vector.load %arg11[%c0_19, %c0_20] : memref<136x128xf32, #tpu.memory_space<vmem>>, vector<136x128xf32>
    tpu.vector_store %arg11[%c0_19, %c0_20], %32 {strides = array<i32>} : memref<136x128xf32, #tpu.memory_space<vmem>>, vector<136x128xf32>,
    %c128_i32 = arith.constant 128 : i32
    %34 = arith.muli %arg1, %c128_i32 : i32
    %c4_i32 = arith.constant 4 : i32
    %35 = arith.subi %34, %c4_i32 : i32
    %c0_i32_21 = arith.constant 0 : i32
    %36 = arith.cmpi slt, %35, %c0_i32_21 : i32
    %c128_i32_22 = arith.constant 128 : i32
    %37 = arith.addi %34, %c128_i32_22 : i32
    %c4_i32_23 = arith.constant 4 : i32
    %38 = arith.addi %37, %c4_i32_23 : i32
    %c197_i32 = arith.constant 197 : i32
    %39 = arith.cmpi sgt, %38, %c197_i32 : i32
    %40 = arith.ori %36, %39 : i1
    %41 = arith.extui %40 : i1 to i32
    %c0_i32_24 = arith.constant 0 : i32
    %42 = arith.cmpi ne, %41, %c0_i32_24 : i32
    scf.if %42 {
      %c4_i32_44 = arith.constant 4 : i32
      %63 = arith.subi %34, %c4_i32_44 : i32
      %64 = tpu.iota {dimensions = array<i32: 0>} : vector<136x1xi32>
      %65 = vector.broadcast %63 : i32 to vector<136x1xi32>
      %66 = arith.addi %65, %64 : vector<136x1xi32>
      %c0_i32_45 = arith.constant 0 : i32
      %67 = vector.broadcast %c0_i32_45 : i32 to vector<136x1xi32>
      %68 = arith.cmpi sge, %66, %67 : vector<136x1xi32>
      %c197_i32_46 = arith.constant 197 : i32
      %69 = vector.broadcast %c197_i32_46 : i32 to vector<136x1xi32>
      %70 = arith.cmpi slt, %66, %69 : vector<136x1xi32>
      %71 = arith.andi %68, %70 : vector<136x1xi1>
      %c0_47 = arith.constant 0 : index
      %c0_48 = arith.constant 0 : index
      %72 = vector.load %arg11[%c0_47, %c0_48] : memref<136x128xf32, #tpu.memory_space<vmem>>, vector<136x128xf32>
      %cst_49 = arith.constant 0.000000e+00 : f32
      %73 = vector.shape_cast %71 : vector<136x1xi1> to vector<136x1xi1>
      %74 = vector.broadcast %73 : vector<136x1xi1> to vector<136x128xi1>
      %75 = vector.broadcast %cst_49 : f32 to vector<136x128xf32>
      %76 = arith.select %74, %72, %75 : vector<136x128xi1>, vector<136x128xf32>
      %c0_50 = arith.constant 0 : index
      %c0_51 = arith.constant 0 : index
      %77 = vector.load %arg11[%c0_50, %c0_51] : memref<136x128xf32, #tpu.memory_space<vmem>>, vector<136x128xf32>
      tpu.vector_store %arg11[%c0_50, %c0_51], %76 {strides = array<i32>} : memref<136x128xf32, #tpu.memory_space<vmem>>, vector<136x128xf32>,
    } else {
    }
    %c0_25 = arith.constant 0 : index
    %c0_26 = arith.constant 0 : index
    %43 = vector.load %arg11[%c0_25, %c0_26] : memref<136x128xf32, #tpu.memory_space<vmem>>, vector<136x128xf32>
    %cst_27 = arith.constant 1.000000e-01 : f32
    %44 = vector.broadcast %cst_27 : f32 to vector<136x128xf32>
    %45 = arith.mulf %44, %43 : vector<136x128xf32>
    %46 = arith.maximumf %43, %45 : vector<136x128xf32>
    %47 = arith.truncf %46 : vector<136x128xf32> to vector<136x128xbf16>
    %c0_28 = arith.constant 0 : index
    %c0_29 = arith.constant 0 : index
    %48 = vector.load %arg10[%c0_28, %c0_29] : memref<144x128xbf16, #tpu.memory_space<vmem>>, vector<136x128xbf16>
    tpu.vector_store %arg10[%c0_28, %c0_29], %47 {strides = array<i32>} : memref<144x128xbf16, #tpu.memory_space<vmem>>, vector<136x128xbf16>,
    %c1 = arith.constant 1 : index
    %c0_30 = arith.constant 0 : index
    %49 = vector.load %arg10[%c1, %c0_30] : memref<144x128xbf16, #tpu.memory_space<vmem>>, vector<128x128xbf16>
    %c4_31 = arith.constant 4 : index
    %c0_32 = arith.constant 0 : index
    %50 = vector.load %arg10[%c4_31, %c0_32] : memref<144x128xbf16, #tpu.memory_space<vmem>>, vector<128x128xbf16>
    %c7 = arith.constant 7 : index
    %c0_33 = arith.constant 0 : index
    %51 = vector.load %arg10[%c7, %c0_33] : memref<144x128xbf16, #tpu.memory_space<vmem>>, vector<128x128xbf16>
    %52 = tpu.concatenate %49, %50, %51 in 1 : vector<128x128xbf16>, vector<128x128xbf16>, vector<128x128xbf16> -> vector<128x384xbf16>
    %c0_34 = arith.constant 0 : index
    %c0_35 = arith.constant 0 : index
    %53 = vector.load %arg5[%c0_34, %c0_35] : memref<384x128xbf16, #tpu.memory_space<vmem>>, vector<384x128xbf16>
    %cst_36 = arith.constant dense<0.000000e+00> : vector<128x128xf32>
    %54 = tpu.matmul %52, %53, %cst_36 {dimension_numbers = #tpu.dot_dimension_numbers<[1], [0], [0], [1], [0, 0, 1, 1], [], []>} : vector<128x384xbf16>, vector<384x128xbf16>, vector<128x128xf32> -> vector<128x128xf32>
    %c0_37 = arith.constant 0 : index
    %c0_38 = arith.constant 0 : index
    %55 = vector.load %arg6[%c0_37, %c0_38] : memref<1x128xf32, #tpu.memory_space<vmem>>, vector<1x128xf32>
    %56 = vector.broadcast %55 : vector<1x128xf32> to vector<128x128xf32>
    %57 = arith.addf %54, %56 : vector<128x128xf32>
    %c4_39 = arith.constant 4 : index
    %c0_40 = arith.constant 0 : index
    %58 = vector.load %arg11[%c4_39, %c0_40] : memref<136x128xf32, #tpu.memory_space<vmem>>, vector<128x128xf32>
    %59 = arith.addf %57, %58 : vector<128x128xf32>
    %c0_41 = arith.constant 0 : index
    %c0_42 = arith.constant 0 : index
    %c0_43 = arith.constant 0 : index
    %60 = vector.load %arg7[%c0_41, %c0_42, %c0_43] : memref<1x128x128xf32, #tpu.memory_space<vmem>>, vector<1x128x128xf32>
    %61 = vector.shape_cast %60 : vector<1x128x128xf32> to vector<128x128xf32>
    %62 = vector.shape_cast %59 : vector<128x128xf32> to vector<1x128x128xf32>
    tpu.vector_store %arg7[%c0_41, %c0_42, %c0_43], %62 {strides = array<i32>} : memref<1x128x128xf32, #tpu.memory_space<vmem>>, vector<1x128x128xf32>,
    return
  }
  func.func @transform_1(%arg0: i32, %arg1: i32) -> (i32, i32) {
    %c0_i32 = arith.constant 0 : i32
    %c0_i32_0 = arith.constant 0 : i32
    %c0_i32_1 = arith.constant 0 : i32
    return %c0_i32, %c0_i32_0 : i32, i32
  }
  func.func @transform_2(%arg0: i32, %arg1: i32) -> (i32, i32) {
    %c0_i32 = arith.constant 0 : i32
    %c0_i32_0 = arith.constant 0 : i32
    %c0_i32_1 = arith.constant 0 : i32
    return %c0_i32, %c0_i32_0 : i32, i32
  }
  func.func @transform_3(%arg0: i32, %arg1: i32) -> (i32, i32) {
    %c0_i32 = arith.constant 0 : i32
    %c0_i32_0 = arith.constant 0 : i32
    %c0_i32_1 = arith.constant 0 : i32
    return %c0_i32, %c0_i32_0 : i32, i32
  }
  func.func @transform_4(%arg0: i32, %arg1: i32) -> (i32, i32) {
    %c0_i32 = arith.constant 0 : i32
    %c0_i32_0 = arith.constant 0 : i32
    %c0_i32_1 = arith.constant 0 : i32
    return %c0_i32, %c0_i32_0 : i32, i32
  }
  func.func @transform_5(%arg0: i32, %arg1: i32) -> (i32, i32, i32) {
    %c0_i32 = arith.constant 0 : i32
    %c0_i32_0 = arith.constant 0 : i32
    return %arg0, %arg1, %c0_i32 : i32, i32, i32
  }
}

</mosaic_0001>

<llo_original>
// kernel: tpu_custom_call.1
$region0: #{tpu_custom_call.1}
  #allocation0 [shape = 'u32[]', space=smem, size = 0x4, offset = 0x4, fixed_abs, tag = 'smem constant byte address 0x4 - core index']
  #allocation1 [shape = 'u32[144,128]{1,0:T(1,128)}', space=vmem, size = 0x12000, scoped, tag = 'internal scratch']
  #allocation2 [shape = 'f32[2,144,128]{2,1,0:T(8,128)}', space=vmem, size = 0x24000, scoped, tag = 'scratch operand']
  #allocation3 [shape = 's32[2]{0}', space=sflag, size = 0x8, scoped, tag = 'scratch operand']
  #allocation4 [shape = 'bf16[144,128]{1,0:T(8,128)(2,1)}', space=vmem, size = 0x9000, scoped, tag = 'scratch operand']
  #allocation5 [shape = 'f32[136,128]{1,0:T(8,128)}', space=vmem, size = 0x11000, scoped, tag = 'scratch operand']
  #allocation12 [shape = 's32[]', space=sflag, size = 0x4, offset = 0, fixed_abs, tag = 'sflag constant byte address 0x0 - dummy sync flag']
  #allocation13 [shape = 's32[]', space=sflag, size = 0x4, offset = 0, fixed_abs, tag = 'sflag constant byte address 0x0 - dummy sync flag']
  #allocation14 [shape = 'u32[]', space=smem, size = 0x4, offset = 0x44, fixed_abs, tag = 'smem constant byte address 0x44 - assertion arg 0']
  #allocation15 [shape = 'u32[]', space=smem, size = 0x4, offset = 0x48, fixed_abs, tag = 'smem constant byte address 0x48 - assertion arg 1']
  #allocation16 [shape = 's32[]', space=sflag, size = 0x4, offset = 0, fixed_abs, tag = 'sflag constant byte address 0x0 - dummy sync flag']
  #allocation17 [shape = 's32[]', space=sflag, size = 0x4, offset = 0, fixed_abs, tag = 'sflag constant byte address 0x0 - dummy sync flag']
  %s0 = inlined_call_operand.hbm [shape: f32[2,272,128], index: 0, kind: input, shape index: {}]
  %s1 = inlined_call_operand.hbm [shape: bf16[384,128], index: 1, kind: input, shape index: {}]
  %s2 = inlined_call_operand.vmem [shape: f32[1,128], index: 2, kind: input, shape index: {}]
  %s3 = inlined_call_operand.hbm [shape: bf16[384,128], index: 3, kind: input, shape index: {}]
  %s4 = inlined_call_operand.vmem [shape: f32[1,128], index: 4, kind: input, shape index: {}]
  %s5 = inlined_call_operand.hbm [shape: f32[2,256,128], index: 5, kind: output, shape index: {}]
  %s6 = sld [smem:[#allocation0]]
  $region77: #{tpu_custom_call.1} parent=0
    _
  %s8 = ssub.s32 1, %s6
  %s9 = scalar_select 0, %s8, %s6
  $region1: #{tpu_custom_call.1} parent=0
    #allocation6 [shape = 'u8[98304]{0}', space=vmem, size = 0x18000, scoped, tag = 'input window, operand 1, single buffered']
    #allocation7 [shape = 's32[2]{0}', space=sflag, size = 0x8, scoped, tag = 'scoped memory for tpu_custom_call.1']
    #allocation8 [shape = 's32[2]{0}', space=sflag, size = 0x8, scoped, tag = 'scoped memory for tpu_custom_call.1']
    #allocation9 [shape = 'u8[98304]{0}', space=vmem, size = 0x18000, scoped, tag = 'input window, operand 3, single buffered']
    #allocation10 [shape = 's32[1]{0}', space=sflag, size = 0x4, scoped, tag = 'scoped memory for tpu_custom_call.1']
    #allocation11 [shape = 'u8[131072]{0}', space=vmem, size = 0x20000, scoped, tag = 'output window, operand 0']
    %10 = vsyncpa [#allocation7], 0
    %11 = vsyncpa [#allocation10], 0
    %12 = vsyncpa [#allocation8], 0
    %s13 = scalar_lea.sflag [#allocation8], 1
    %14 = vsyncpa %s13, 0
    loop: start=0, step=1, limit=6
    $region2: #{tpu_custom_call.1} parent=1 // loop_pre_header
      _
    $region3: #{tpu_custom_call.1} parent=1 // loop_header
      %s16 = sphi 0, %s20
      %p17 = scmp.ge.s32.totalorder %s16, 6
      %s23 = sphi 0, %s35
      %s24 = sphi 0, %s31
      %s25 = sphi 0, %s23
      %s26 = sphi 0, %s24
      %s27 = sphi 0, %s25
      %s28 = sphi 0, %s26
      %s36 = sphi 0, %s36
      %s38 = sphi 0, %s36
      %s39 = sphi 0, %s38
      %s53 = sphi 0, %s39
      %s57 = sphi 0, %s57
      %s59 = sphi 0, %s57
      %s60 = sphi 0, %s59
      %s74 = sphi 0, %s60
      %s78 = sphi 0, %s78
      %s80 = sphi 0, %s78
      %s81 = sphi 0, %s80
      %s95 = sphi 0, %s81
      %s99 = sphi 0, %s99
      %s101 = sphi 0, %s99
      %s102 = sphi 0, %s101
      %s116 = sphi 0, %s102
      %s124 = sphi 0, %s126
      %s127 = sphi 0, %s124
      %s128 = sphi 0, %s127
      %s144 = sphi 0, %s128
    $region4: #{tpu_custom_call.1} parent=1 // loop_header_branch
      %19 = sbr.rel (%p17) target = $region8
    $region5: #{tpu_custom_call.1} parent=1 // loop_body
      %s21 = ssub.s32 %s16, 1
      %s22 = ssub.s32 %s16, 2
      %s29 = sadd.s32 1, %s24
      %p30 = scmp.ge.s32.totalorder %s29, 2
      %s31 = scalar_select %p30, 0, %s29
      %s32 = sadd.s32 1, %s23
      %s33 = scalar_select %p30, %s32, %s23
      %p34 = scmp.ge.s32.totalorder %s33, 2
      %s35 = scalar_select %p34, 0, %s33
      %s37 = sadd.s32 %s36, 1
      %p40 = scmp.eq.s32.totalorder %s16, 3
      %p41 = scmp.ne.s32.totalorder %s36, %s38
      %p42 = scmp.eq.s32.totalorder %s16, 0
      %p43 = por %p41, %p42
      %p44 = scmp.ne.s32.totalorder %s36, %s38
      %p45 = scmp.eq.s32.totalorder %s21, 3
      %p46 = por %p44, %p45
      %p47 = scmp.ne.s32.totalorder %s38, %s39
      %p48 = scmp.eq.s32.totalorder %s21, 0
      %p49 = por %p47, %p48
      %p50 = scmp.ne.s32.totalorder %s38, %s39
      %p51 = scmp.eq.s32.totalorder %s22, 3
      %p52 = por %p50, %p51
      %p54 = scmp.ne.s32.totalorder %s39, %s53
      %p55 = scmp.eq.s32.totalorder %s22, 0
      %p56 = por %p54, %p55
      %s58 = sadd.s32 %s57, 1
      %p61 = scmp.eq.s32.totalorder %s16, 3
      %p62 = scmp.ne.s32.totalorder %s57, %s59
      %p63 = scmp.eq.s32.totalorder %s16, 0
      %p64 = por %p62, %p63
      %p65 = scmp.ne.s32.totalorder %s57, %s59
      %p66 = scmp.eq.s32.totalorder %s21, 3
      %p67 = por %p65, %p66
      %p68 = scmp.ne.s32.totalorder %s59, %s60
      %p69 = scmp.eq.s32.totalorder %s21, 0
      %p70 = por %p68, %p69
      %p71 = scmp.ne.s32.totalorder %s59, %s60
      %p72 = scmp.eq.s32.totalorder %s22, 3
      %p73 = por %p71, %p72
      %p75 = scmp.ne.s32.totalorder %s60, %s74
      %p76 = scmp.eq.s32.totalorder %s22, 0
      %p77 = por %p75, %p76
      %s79 = sadd.s32 %s78, 1
      %p82 = scmp.eq.s32.totalorder %s16, 3
      %p83 = scmp.ne.s32.totalorder %s78, %s80
      %p84 = scmp.eq.s32.totalorder %s16, 0
      %p85 = por %p83, %p84
      %p86 = scmp.ne.s32.totalorder %s78, %s80
      %p87 = scmp.eq.s32.totalorder %s21, 3
      %p88 = por %p86, %p87
      %p89 = scmp.ne.s32.totalorder %s80, %s81
      %p90 = scmp.eq.s32.totalorder %s21, 0
      %p91 = por %p89, %p90
      %p92 = scmp.ne.s32.totalorder %s80, %s81
      %p93 = scmp.eq.s32.totalorder %s22, 3
      %p94 = por %p92, %p93
      %p96 = scmp.ne.s32.totalorder %s81, %s95
      %p97 = scmp.eq.s32.totalorder %s22, 0
      %p98 = por %p96, %p97
      %s100 = sadd.s32 %s99, 1
      %p103 = scmp.eq.s32.totalorder %s16, 3
      %p104 = scmp.ne.s32.totalorder %s99, %s101
      %p105 = scmp.eq.s32.totalorder %s16, 0
      %p106 = por %p104, %p105
      %p107 = scmp.ne.s32.totalorder %s99, %s101
      %p108 = scmp.eq.s32.totalorder %s21, 3
      %p109 = por %p107, %p108
      %p110 = scmp.ne.s32.totalorder %s101, %s102
      %p111 = scmp.eq.s32.totalorder %s21, 0
      %p112 = por %p110, %p111
      %p113 = scmp.ne.s32.totalorder %s101, %s102
      %p114 = scmp.eq.s32.totalorder %s22, 3
      %p115 = por %p113, %p114
      %p117 = scmp.ne.s32.totalorder %s102, %s116
      %p118 = scmp.eq.s32.totalorder %s22, 0
      %p119 = por %p117, %p118
      %s120 = ssub.s32 %s23, %s35
      %s121 = ssub.s32 %s24, %s31
      %s122 = sor.u32 %s120, %s121
      %p123 = scmp.eq.s32.totalorder %s122, 0
      %s125 = sadd.s32 %s124, 1
      %s126 = scalar_select %p123, %s124, %s125
      %p129 = pneg %p123
      %p130 = scmp.eq.s32.totalorder %s16, 3
      %p131 = por %p129, %p130
      %p132 = scmp.ne.s32.totalorder %s124, %s127
      %p133 = scmp.eq.s32.totalorder %s16, 0
      %p134 = por %p132, %p133
      %p135 = scmp.ne.s32.totalorder %s124, %s127
      %p136 = scmp.eq.s32.totalorder %s21, 3
      %p137 = por %p135, %p136
      %p138 = scmp.ne.s32.totalorder %s127, %s128
      %p139 = scmp.eq.s32.totalorder %s21, 0
      %p140 = por %p138, %p139
      %p141 = scmp.ne.s32.totalorder %s127, %s128
      %p142 = scmp.eq.s32.totalorder %s22, 3
      %p143 = por %p141, %p142
      %p145 = scmp.ne.s32.totalorder %s128, %s144
      %p146 = scmp.eq.s32.totalorder %s22, 0
      %p147 = por %p145, %p146
      %p148 = scmp.le.s32.totalorder 1, %s16
      %p149 = scmp.lt.s32.totalorder %s16, 5
      %p150 = pnand %p148, %p149
      %p151 = pneg %p150
      // Predicated region
      $region9: #{tpu_custom_call.1} parent=5 // pred_check
        _
      $region10: #{tpu_custom_call.1} parent=5 // pred_check_branch
        %153 = sbr.rel (%p150) target = $region12
      $region11: #{tpu_custom_call.1} parent=5 // pred_region
        %s154 = ssub.s32 %s16, 1
        // Predicated region
        $region13: #{tpu_custom_call.1} parent=11 // pred_check
          %p155 = pneg %p49
        $region14: #{tpu_custom_call.1} parent=11 // pred_check_branch
          %157 = sbr.rel (%p155) target = $region16
        $region15: #{tpu_custom_call.1} parent=11 // pred_region
          %s159 = ssub.s32 3072, 3072
          %160 = vsyncadd [#allocation7], %s159
          %s161 = sshll.u32 [#allocation6], 4
          %s162 = int_to_ptr.vmem [resolvable:$true] %s161
          %167 = dma.hbm_to_vmem [thread:$0]  %s1, 3072, %s162, [#allocation7], 64, 64, 4
        $region16: #{tpu_custom_call.1} parent=11 // pred_fallthru
          _
        // Predicated region
        $region17: #{tpu_custom_call.1} parent=11 // pred_check
          %p168 = pneg %p70
        $region18: #{tpu_custom_call.1} parent=11 // pred_check_branch
          %170 = sbr.rel (%p168) target = $region20
        $region19: #{tpu_custom_call.1} parent=11 // pred_region
          _
        $region20: #{tpu_custom_call.1} parent=11 // pred_fallthru
          _
        // Predicated region
        $region21: #{tpu_custom_call.1} parent=11 // pred_check
          %p171 = pneg %p91
        $region22: #{tpu_custom_call.1} parent=11 // pred_check_branch
          %173 = sbr.rel (%p171) target = $region24
        $region23: #{tpu_custom_call.1} parent=11 // pred_region
          %s175 = ssub.s32 3072, 3072
          %176 = vsyncadd [#allocation10], %s175
          %s177 = sshll.u32 [#allocation9], 4
          %s178 = int_to_ptr.vmem [resolvable:$true] %s177
          %183 = dma.hbm_to_vmem [thread:$0]  %s3, 3072, %s178, [#allocation10], 64, 64, 4
        $region24: #{tpu_custom_call.1} parent=11 // pred_fallthru
          _
        // Predicated region
        $region25: #{tpu_custom_call.1} parent=11 // pred_check
          %p184 = pneg %p112
        $region26: #{tpu_custom_call.1} parent=11 // pred_check_branch
          %186 = sbr.rel (%p184) target = $region28
        $region27: #{tpu_custom_call.1} parent=11 // pred_region
          _
        $region28: #{tpu_custom_call.1} parent=11 // pred_fallthru
          _
      $region12: #{tpu_custom_call.1} parent=5 // pred_fallthru
        _
      %p187 = scmp.lt.s32.totalorder %s16, 4
      // Predicated region
      $region29: #{tpu_custom_call.1} parent=5 // pred_check
        %p188 = pneg %p187
      $region30: #{tpu_custom_call.1} parent=5 // pred_check_branch
        %190 = sbr.rel (%p188) target = $region32
      $region31: #{tpu_custom_call.1} parent=5 // pred_region
        _
      $region32: #{tpu_custom_call.1} parent=5 // pred_fallthru
        _
      %p191 = scmp.le.s32.totalorder 1, %s16
      %p192 = scmp.lt.s32.totalorder %s16, 5
      %p193 = pnand %p191, %p192
      %p194 = pneg %p193
      // Predicated region
      $region33: #{tpu_custom_call.1} parent=5 // pred_check
        _
      $region34: #{tpu_custom_call.1} parent=5 // pred_check_branch
        %196 = sbr.rel (%p193) target = $region36
      $region35: #{tpu_custom_call.1} parent=5 // pred_region
        %s197 = ssub.s32 %s16, 1
        // Predicated region
        $region37: #{tpu_custom_call.1} parent=35 // pred_check
          %p198 = pneg %p49
        $region38: #{tpu_custom_call.1} parent=35 // pred_check_branch
          %200 = sbr.rel (%p198) target = $region40
        $region39: #{tpu_custom_call.1} parent=35 // pred_region
          %201 = dma.done [#allocation7], 3072
        $region40: #{tpu_custom_call.1} parent=35 // pred_fallthru
          _
        // Predicated region
        $region41: #{tpu_custom_call.1} parent=35 // pred_check
          %p202 = pneg %p91
        $region42: #{tpu_custom_call.1} parent=35 // pred_check_branch
          %204 = sbr.rel (%p202) target = $region44
        $region43: #{tpu_custom_call.1} parent=35 // pred_region
          %205 = dma.done [#allocation10], 3072
        $region44: #{tpu_custom_call.1} parent=35 // pred_fallthru
          _
        %p206 = pneg %p49
        %p207 = pneg %p46
        %p208 = pneg %p70
        %p209 = pneg %p67
        %p210 = pneg %p91
        %p211 = pneg %p88
        %p212 = pneg %p112
        %p213 = pneg %p109
        %p214 = pneg %p140
        %p215 = pneg %p137
        %s216 = sand.u32 %s127, 1
        %s217 = scalar_lea.sflag [#allocation8], %s216
        %s218 = sand.u32 %s127, 1
        %s219 = smul.addr %s218, 128
        %s220 = scalar_lea.vmem [#allocation11], %s219
        %s221 = smul.u32 16, %s26
        %p223 = scmp.lt.s32.totalorder %s26, 0
        %s224 = ssub.s32 0, %s26
        %s225 = scalar_select %p223, %s224, %s26
        %s226 = sand.u32 %s225, 1
        %s227 = ssub.s32 0, %s226
        %s228 = scalar_select %p223, %s227, %s226
        %p229 = scmp.eq.s32.totalorder %s26, 0
        // Predicated region
        $region45: #{tpu_custom_call.1} parent=35 // pred_check
          %p230 = pneg %p229
        $region46: #{tpu_custom_call.1} parent=35 // pred_check_branch
          %232 = sbr.rel (%p230) target = $region48
        $region47: #{tpu_custom_call.1} parent=35 // pred_region
          %s233 = smul.u32 %s25, 272
          %s234 = smul.addr %s233, 16
          %s235 = scalar_lea.hbm %s0, %s234
          // Predicated region
          $region49: #{tpu_custom_call.1} parent=47 // pred_check
            _
          $region50: #{tpu_custom_call.1} parent=47 // pred_check_branch
            %237 = sbr.rel target = $region52
          $region51: #{tpu_custom_call.1} parent=47 // pred_region
            %238 = sst [smem:[#allocation14]] [#allocation13]
            %239 = sst [smem:[#allocation15]] [#allocation12]
          $region52: #{tpu_custom_call.1} parent=47 // pred_fallthru
            _
          %241 = shalt.err (0)
          %s243 = sshll.u32 [#allocation2], 4
          %s244 = int_to_ptr.vmem [resolvable:$true] %s243
          %246 = dma.hbm_to_vmem [thread:$0]  %s235, 2304, %s244, [#allocation3]
        $region48: #{tpu_custom_call.1} parent=35 // pred_fallthru
          _
        %s247 = sadd.s32 %s26, 1
        %p248 = scmp.lt.s32.totalorder %s247, 2
        // Predicated region
        $region53: #{tpu_custom_call.1} parent=35 // pred_check
          %p249 = pneg %p248
        $region54: #{tpu_custom_call.1} parent=35 // pred_check_branch
          %251 = sbr.rel (%p249) target = $region56
        $region55: #{tpu_custom_call.1} parent=35 // pred_region
          %s252 = ssub.s32 1, %s228
          %s253 = smul.u32 %s247, 128
          %s254 = smul.u32 %s25, 272
          %s255 = sadd.s32 %s253, %s254
          %s256 = smul.addr %s255, 16
          %s257 = scalar_lea.hbm %s0, %s256
          %s258 = smul.u32 %s252, 144
          %s259 = scalar_lea.vmem [#allocation2], %s258
          %s260 = scalar_lea.sflag [#allocation3], %s252
          // Predicated region
          $region57: #{tpu_custom_call.1} parent=55 // pred_check
            _
          $region58: #{tpu_custom_call.1} parent=55 // pred_check_branch
            %262 = sbr.rel target = $region60
          $region59: #{tpu_custom_call.1} parent=55 // pred_region
            %263 = sst [smem:[#allocation14]] [#allocation17]
            %264 = sst [smem:[#allocation15]] [#allocation16]
          $region60: #{tpu_custom_call.1} parent=55 // pred_fallthru
            _
          %266 = shalt.err (0)
          %s268 = sshll.u32 %s259, 4
          %s269 = int_to_ptr.vmem [resolvable:$true] %s268
          %271 = dma.hbm_to_vmem [thread:$0]  %s257, 2304, %s269, %s260
        $region56: #{tpu_custom_call.1} parent=35 // pred_fallthru
          _
        %s272 = smul.u32 %s228, 144
        %s273 = scalar_lea.vmem [#allocation2], %s272
        %s274 = scalar_lea.sflag [#allocation3], %s228
        %s275 = smul.u32 144, 1
        %s276 = sshll.u32 %s275, 4
        %277 = dma.done %s274, %s276
        %v278 = vld [vmem:[%s273] sm:$0xff]
        %v279 = vld [vmem:[%s273 + $0x8] sm:$0xff]
        %v280 = vld [vmem:[%s273 + $0x10] sm:$0xff]
        %v281 = vld [vmem:[%s273 + $0x18] sm:$0xff]
        %v282 = vld [vmem:[%s273 + $0x20] sm:$0xff]
        %v283 = vld [vmem:[%s273 + $0x28] sm:$0xff]
        %v284 = vld [vmem:[%s273 + $0x30] sm:$0xff]
        %v285 = vld [vmem:[%s273 + $0x38] sm:$0xff]
        %v286 = vld [vmem:[%s273 + $0x40] sm:$0xff]
        %v287 = vld [vmem:[%s273 + $0x48] sm:$0xff]
        %v288 = vld [vmem:[%s273 + $0x50] sm:$0xff]
        %v289 = vld [vmem:[%s273 + $0x58] sm:$0xff]
        %v290 = vld [vmem:[%s273 + $0x60] sm:$0xff]
        %v291 = vld [vmem:[%s273 + $0x68] sm:$0xff]
        %v292 = vld [vmem:[%s273 + $0x70] sm:$0xff]
        %v293 = vld [vmem:[%s273 + $0x78] sm:$0xff]
        %v294 = vld [vmem:[%s273 + $0x80] sm:$0xff]
        %v295 = vld [vmem:[%s273 + $0x88] sm:$0xff]
        %v296 = vmul.f32 %v278, 0.1
        %v297 = vmul.f32 %v279, 0.1
        %v298 = vmul.f32 %v280, 0.1
        %v299 = vmul.f32 %v281, 0.1
        %v300 = vmul.f32 %v282, 0.1
        %v301 = vmul.f32 %v283, 0.1
        %v302 = vmul.f32 %v284, 0.1
        %v303 = vmul.f32 %v285, 0.1
        %v304 = vmul.f32 %v286, 0.1
        %v305 = vmul.f32 %v287, 0.1
        %v306 = vmul.f32 %v288, 0.1
        %v307 = vmul.f32 %v289, 0.1
        %v308 = vmul.f32 %v290, 0.1
        %v309 = vmul.f32 %v291, 0.1
        %v310 = vmul.f32 %v292, 0.1
        %v311 = vmul.f32 %v293, 0.1
        %v312 = vmul.f32 %v294, 0.1
        %v313 = vmul.f32 %v295, 0.1
        %v314 = vmax.f32 %v278, %v296
        %v315 = vmax.f32 %v279, %v297
        %v316 = vmax.f32 %v280, %v298
        %v317 = vmax.f32 %v281, %v299
        %v318 = vmax.f32 %v282, %v300
        %v319 = vmax.f32 %v283, %v301
        %v320 = vmax.f32 %v284, %v302
        %v321 = vmax.f32 %v285, %v303
        %v322 = vmax.f32 %v286, %v304
        %v323 = vmax.f32 %v287, %v305
        %v324 = vmax.f32 %v288, %v306
        %v325 = vmax.f32 %v289, %v307
        %v326 = vmax.f32 %v290, %v308
        %v327 = vmax.f32 %v291, %v309
        %v328 = vmax.f32 %v292, %v310
        %v329 = vmax.f32 %v293, %v311
        %v330 = vmax.f32 %v294, %v312
        %v331 = vmax.f32 %v295, %v313
        %v332 = vpack.c.bf16 %v315, %v314
        %v333 = vpack.c.bf16 %v317, %v316
        %v334 = vpack.c.bf16 %v319, %v318
        %v335 = vpack.c.bf16 %v321, %v320
        %v336 = vpack.c.bf16 %v323, %v322
        %v337 = vpack.c.bf16 %v325, %v324
        %v338 = vpack.c.bf16 %v327, %v326
        %v339 = vpack.c.bf16 %v329, %v328
        %v340 = vpack.c.bf16 %v331, %v330
        %v350 = vunpack.c.l.b16 %v332
        %v351 = vunpack.c.h.b16 %v332
        %v352 = vunpack.c.l.b16 %v333
        %v353 = vunpack.c.h.b16 %v333
        %v354 = vunpack.c.l.b16 %v334
        %v355 = vunpack.c.h.b16 %v334
        %v356 = vunpack.c.l.b16 %v335
        %v357 = vunpack.c.h.b16 %v335
        %v358 = vunpack.c.l.b16 %v336
        %v359 = vunpack.c.h.b16 %v336
        %v360 = vunpack.c.l.b16 %v337
        %v361 = vunpack.c.h.b16 %v337
        %v362 = vunpack.c.l.b16 %v338
        %v363 = vunpack.c.h.b16 %v338
        %v364 = vunpack.c.l.b16 %v339
        %v365 = vunpack.c.h.b16 %v339
        %v366 = vunpack.c.l.b16 %v340
        %v367 = vunpack.c.h.b16 %v340
        %v368 = vpack.c.b16 %v350, %v350
        %v369 = vpack.c.b16 %v351, %v351
        %v370 = vpack.c.b16 %v352, %v352
        %v371 = vpack.c.b16 %v353, %v353
        %v372 = vpack.c.b16 %v354, %v354
        %v373 = vpack.c.b16 %v355, %v355
        %v374 = vpack.c.b16 %v356, %v356
        %v375 = vpack.c.b16 %v357, %v357
        %v376 = vpack.c.b16 %v358, %v358
        %v377 = vpack.c.b16 %v359, %v359
        %v378 = vpack.c.b16 %v360, %v360
        %v379 = vpack.c.b16 %v361, %v361
        %v380 = vpack.c.b16 %v362, %v362
        %v381 = vpack.c.b16 %v363, %v363
        %v382 = vpack.c.b16 %v364, %v364
        %v383 = vpack.c.b16 %v365, %v365
        %v384 = vpack.c.b16 %v366, %v366
        %v385 = vpack.c.b16 %v367, %v367
        %404 = vst [vmem:[#allocation4] sm:$0xf] %v368
        %405 = vst [vmem:[#allocation4 + $0x4] sm:$0xf] %v369
        %406 = vst [vmem:[#allocation4 + $0x8] sm:$0xf] %v370
        %407 = vst [vmem:[#allocation4 + $0xc] sm:$0xf] %v371
        %408 = vst [vmem:[#allocation4 + $0x10] sm:$0xf] %v372
        %409 = vst [vmem:[#allocation4 + $0x14] sm:$0xf] %v373
        %410 = vst [vmem:[#allocation4 + $0x18] sm:$0xf] %v374
        %411 = vst [vmem:[#allocation4 + $0x1c] sm:$0xf] %v375
        %412 = vst [vmem:[#allocation4 + $0x20] sm:$0xf] %v376
        %413 = vst [vmem:[#allocation4 + $0x24] sm:$0xf] %v377
        %414 = vst [vmem:[#allocation4 + $0x28] sm:$0xf] %v378
        %415 = vst [vmem:[#allocation4 + $0x2c] sm:$0xf] %v379
        %416 = vst [vmem:[#allocation4 + $0x30] sm:$0xf] %v380
        %417 = vst [vmem:[#allocation4 + $0x34] sm:$0xf] %v381
        %418 = vst [vmem:[#allocation4 + $0x38] sm:$0xf] %v382
        %419 = vst [vmem:[#allocation4 + $0x3c] sm:$0xf] %v383
        %420 = vst [vmem:[#allocation4 + $0x40] sm:$0xf] %v384
        %421 = vst [vmem:[#allocation4 + $0x44] sm:$0xf] %v385
        %v422 = vld [vmem:[#allocation4] sm:$0xe]
        %v423 = vld [vmem:[#allocation4 + $0x4] sm:$0xf]
        %v424 = vld [vmem:[#allocation4 + $0x8] sm:$0xf]
        %v425 = vld [vmem:[#allocation4 + $0xc] sm:$0xf]
        %v426 = vld [vmem:[#allocation4 + $0x10] sm:$0xf]
        %v427 = vld [vmem:[#allocation4 + $0x14] sm:$0xf]
        %v428 = vld [vmem:[#allocation4 + $0x18] sm:$0xf]
        %v429 = vld [vmem:[#allocation4 + $0x1c] sm:$0xf]
        %v430 = vld [vmem:[#allocation4 + $0x20] sm:$0xf]
        %v431 = vld [vmem:[#allocation4 + $0x24] sm:$0xf]
        %v432 = vld [vmem:[#allocation4 + $0x28] sm:$0xf]
        %v433 = vld [vmem:[#allocation4 + $0x2c] sm:$0xf]
        %v434 = vld [vmem:[#allocation4 + $0x30] sm:$0xf]
        %v435 = vld [vmem:[#allocation4 + $0x34] sm:$0xf]
        %v436 = vld [vmem:[#allocation4 + $0x38] sm:$0xf]
        %v437 = vld [vmem:[#allocation4 + $0x3c] sm:$0xf]
        %v438 = vld [vmem:[#allocation4 + $0x40] sm:$0xf]
        %v439 = vld [vmem:[#allocation4 + $0x44] sm:$0x3]
        %v440 = vld [vmem:[#allocation4] sm:$0xc]
        %v441 = vld [vmem:[#allocation4 + $0x44] sm:$0x7]
        %v460 = vunpack.c.l.b16 %v422
        %v461 = vunpack.c.l.b16 %v423
        %v462 = vunpack.c.l.b16 %v424
        %v463 = vunpack.c.l.b16 %v425
        %v464 = vunpack.c.l.b16 %v426
        %v465 = vunpack.c.l.b16 %v427
        %v466 = vunpack.c.l.b16 %v428
        %v467 = vunpack.c.l.b16 %v429
        %v468 = vunpack.c.l.b16 %v430
        %v469 = vunpack.c.l.b16 %v431
        %v470 = vunpack.c.l.b16 %v432
        %v471 = vunpack.c.l.b16 %v433
        %v472 = vunpack.c.l.b16 %v434
        %v473 = vunpack.c.l.b16 %v435
        %v474 = vunpack.c.l.b16 %v436
        %v475 = vunpack.c.l.b16 %v437
        %v476 = vunpack.c.l.b16 %v438
        %v477 = vunpack.c.l.b16 %v439
        %v478 = vpack.c.b16 %v461, %v460
        %v479 = vpack.c.b16 %v463, %v462
        %v480 = vpack.c.b16 %v465, %v464
        %v481 = vpack.c.b16 %v467, %v466
        %v482 = vpack.c.b16 %v469, %v468
        %v483 = vpack.c.b16 %v471, %v470
        %v484 = vpack.c.b16 %v473, %v472
        %v485 = vpack.c.b16 %v475, %v474
        %v486 = vpack.c.b16 %v477, %v476
        %v488 = vunpack.c.l.b16 %v440
        %v489 = vpack.c.b16 %v461, %v488
        %vm490 = vsmask.f32 7424
        %v492 = vshrl.u32 %v489, 16
        %v494 = vshll.u32 %v489, 16
        %v496 = vrot.slane %v494, 1
        %v497 = vor.u32 %v492, %v496
        %v499 = vshll.u32 %v479, 16
        %v501 = vrot.slane %v499, 1
        %v502 = vsel %vm490, %v497, %v501
        %v503 = vshrl.u32 %v479, 16
        %v505 = vor.u32 %v503, %v501
        %v507 = vshll.u32 %v480, 16
        %v509 = vrot.slane %v507, 1
        %v510 = vsel %vm490, %v505, %v509
        %v511 = vshrl.u32 %v480, 16
        %v513 = vor.u32 %v511, %v509
        %v515 = vshll.u32 %v481, 16
        %v517 = vrot.slane %v515, 1
        %v518 = vsel %vm490, %v513, %v517
        %v519 = vshrl.u32 %v481, 16
        %v521 = vor.u32 %v519, %v517
        %v523 = vshll.u32 %v482, 16
        %v525 = vrot.slane %v523, 1
        %v526 = vsel %vm490, %v521, %v525
        %v527 = vshrl.u32 %v482, 16
        %v529 = vor.u32 %v527, %v525
        %v531 = vshll.u32 %v483, 16
        %v533 = vrot.slane %v531, 1
        %v534 = vsel %vm490, %v529, %v533
        %v535 = vshrl.u32 %v483, 16
        %v537 = vor.u32 %v535, %v533
        %v539 = vshll.u32 %v484, 16
        %v541 = vrot.slane %v539, 1
        %v542 = vsel %vm490, %v537, %v541
        %v543 = vshrl.u32 %v484, 16
        %v545 = vor.u32 %v543, %v541
        %v547 = vshll.u32 %v485, 16
        %v549 = vrot.slane %v547, 1
        %v550 = vsel %vm490, %v545, %v549
        %v551 = vshrl.u32 %v485, 16
        %v553 = vor.u32 %v551, %v549
        %v555 = vshll.u32 %v486, 16
        %v557 = vrot.slane %v555, 1
        %v558 = vsel %vm490, %v553, %v557
        %v559 = vshrl.u32 %v486, 16
        %v561 = vor.u32 %v559, %v557
        %v563 = vunpack.c.l.b16 %v441
        %v564 = vpack.c.b16 %v563, %v476
        %vm565 = vcmask 1046528
        %v566 = vrot.slane %v489, 1
        %v567 = vrot.slane %v479, 1
        %v568 = vsel %vm565, %v566, %v567
        %v569 = vrot.slane %v480, 1
        %v570 = vsel %vm565, %v567, %v569
        %v571 = vrot.slane %v481, 1
        %v572 = vsel %vm565, %v569, %v571
        %v573 = vrot.slane %v482, 1
        %v574 = vsel %vm565, %v571, %v573
        %v575 = vrot.slane %v483, 1
        %v576 = vsel %vm565, %v573, %v575
        %v577 = vrot.slane %v484, 1
        %v578 = vsel %vm565, %v575, %v577
        %v579 = vrot.slane %v485, 1
        %v580 = vsel %vm565, %v577, %v579
        %v581 = vrot.slane %v564, 1
        %v582 = vsel %vm565, %v579, %v581
        %v583 = vld [vmem:[#allocation6] sm:$0xf]
        %v584 = vld [vmem:[#allocation6 + $0x4] sm:$0xf]
        %v585 = vld [vmem:[#allocation6 + $0x8] sm:$0xf]
        %v586 = vld [vmem:[#allocation6 + $0xc] sm:$0xf]
        %v587 = vld [vmem:[#allocation6 + $0x10] sm:$0xf]
        %v588 = vld [vmem:[#allocation6 + $0x14] sm:$0xf]
        %v589 = vld [vmem:[#allocation6 + $0x18] sm:$0xf]
        %v590 = vld [vmem:[#allocation6 + $0x1c] sm:$0xf]
        %v591 = vld [vmem:[#allocation6 + $0x20] sm:$0xf]
        %v592 = vld [vmem:[#allocation6 + $0x24] sm:$0xf]
        %v593 = vld [vmem:[#allocation6 + $0x28] sm:$0xf]
        %v594 = vld [vmem:[#allocation6 + $0x2c] sm:$0xf]
        %v595 = vld [vmem:[#allocation6 + $0x30] sm:$0xf]
        %v596 = vld [vmem:[#allocation6 + $0x34] sm:$0xf]
        %v597 = vld [vmem:[#allocation6 + $0x38] sm:$0xf]
        %v598 = vld [vmem:[#allocation6 + $0x3c] sm:$0xf]
        %v599 = vld [vmem:[#allocation6 + $0x40] sm:$0xf]
        %v600 = vld [vmem:[#allocation6 + $0x44] sm:$0xf]
        %v601 = vld [vmem:[#allocation6 + $0x48] sm:$0xf]
        %v602 = vld [vmem:[#allocation6 + $0x4c] sm:$0xf]
        %v603 = vld [vmem:[#allocation6 + $0x50] sm:$0xf]
        %v604 = vld [vmem:[#allocation6 + $0x54] sm:$0xf]
        %v605 = vld [vmem:[#allocation6 + $0x58] sm:$0xf]
        %v606 = vld [vmem:[#allocation6 + $0x5c] sm:$0xf]
        %v607 = vld [vmem:[#allocation6 + $0x60] sm:$0xf]
        %v608 = vld [vmem:[#allocation6 + $0x64] sm:$0xf]
        %v609 = vld [vmem:[#allocation6 + $0x68] sm:$0xf]
        %v610 = vld [vmem:[#allocation6 + $0x6c] sm:$0xf]
        %v611 = vld [vmem:[#allocation6 + $0x70] sm:$0xf]
        %v612 = vld [vmem:[#allocation6 + $0x74] sm:$0xf]
        %v613 = vld [vmem:[#allocation6 + $0x78] sm:$0xf]
        %v614 = vld [vmem:[#allocation6 + $0x7c] sm:$0xf]
        %v615 = vld [vmem:[#allocation6 + $0x80] sm:$0xf]
        %v616 = vld [vmem:[#allocation6 + $0x84] sm:$0xf]
        %v617 = vld [vmem:[#allocation6 + $0x88] sm:$0xf]
        %v618 = vld [vmem:[#allocation6 + $0x8c] sm:$0xf]
        %v619 = vld [vmem:[#allocation6 + $0x90] sm:$0xf]
        %v620 = vld [vmem:[#allocation6 + $0x94] sm:$0xf]
        %v621 = vld [vmem:[#allocation6 + $0x98] sm:$0xf]
        %v622 = vld [vmem:[#allocation6 + $0x9c] sm:$0xf]
        %v623 = vld [vmem:[#allocation6 + $0xa0] sm:$0xf]
        %v624 = vld [vmem:[#allocation6 + $0xa4] sm:$0xf]
        %v625 = vld [vmem:[#allocation6 + $0xa8] sm:$0xf]
        %v626 = vld [vmem:[#allocation6 + $0xac] sm:$0xf]
        %v627 = vld [vmem:[#allocation6 + $0xb0] sm:$0xf]
        %v628 = vld [vmem:[#allocation6 + $0xb4] sm:$0xf]
        %v629 = vld [vmem:[#allocation6 + $0xb8] sm:$0xf]
        %v630 = vld [vmem:[#allocation6 + $0xbc] sm:$0xf]
        %v631 = vld [vmem:[%s2] sm:$0x1]
        %v633 = vlaneseq
        %v634 = vshrl.u32 %v633, 7
        %v635 = vsub.s32 0, %v634
        %v636 = vrot.slane %v631, %v635
        %vm638 = vsmask.f32 6400
        %v640 = vshrl.u32 %v478, 16
        %v642 = vrot.slane %v640, 1
        %v643 = vshll.u32 %v478, 16
        %v645 = vrot.slane %v643, 2
        %v646 = vor.u32 %v642, %v645
        %v647 = vrot.slane %v503, 1
        %v648 = vrot.slane %v499, 2
        %v649 = vor.u32 %v647, %v648
        %v650 = vsel %vm638, %v646, %v649
        %v652 = vshrl.u32 %v502, 16
        %v654 = vrot.slane %v652, 1
        %v655 = vshll.u32 %v502, 16
        %v657 = vrot.slane %v655, 2
        %v658 = vor.u32 %v654, %v657
        %v660 = vshrl.u32 %v510, 16
        %v662 = vrot.slane %v660, 1
        %v663 = vshll.u32 %v510, 16
        %v665 = vrot.slane %v663, 2
        %v666 = vor.u32 %v662, %v665
        %v667 = vsel %vm638, %v658, %v666
        %v669 = vshrl.u32 %v568, 16
        %v671 = vrot.slane %v669, 1
        %v672 = vshll.u32 %v568, 16
        %v674 = vrot.slane %v672, 2
        %v675 = vor.u32 %v671, %v674
        %v677 = vshrl.u32 %v570, 16
        %v679 = vrot.slane %v677, 1
        %v680 = vshll.u32 %v570, 16
        %v682 = vrot.slane %v680, 2
        %v683 = vor.u32 %v679, %v682
        %v684 = vsel %vm638, %v675, %v683
        %v685 = vrot.slane %v511, 1
        %v686 = vrot.slane %v507, 2
        %v687 = vor.u32 %v685, %v686
        %v688 = vsel %vm638, %v649, %v687
        %v690 = vshrl.u32 %v518, 16
        %v692 = vrot.slane %v690, 1
        %v693 = vshll.u32 %v518, 16
        %v695 = vrot.slane %v693, 2
        %v696 = vor.u32 %v692, %v695
        %v697 = vsel %vm638, %v666, %v696
        %v699 = vshrl.u32 %v572, 16
        %v701 = vrot.slane %v699, 1
        %v702 = vshll.u32 %v572, 16
        %v704 = vrot.slane %v702, 2
        %v705 = vor.u32 %v701, %v704
        %v706 = vsel %vm638, %v683, %v705
        %v707 = vrot.slane %v519, 1
        %v708 = vrot.slane %v515, 2
        %v709 = vor.u32 %v707, %v708
        %v710 = vsel %vm638, %v687, %v709
        %v712 = vshrl.u32 %v526, 16
        %v714 = vrot.slane %v712, 1
        %v715 = vshll.u32 %v526, 16
        %v717 = vrot.slane %v715, 2
        %v718 = vor.u32 %v714, %v717
        %v719 = vsel %vm638, %v696, %v718
        %v721 = vshrl.u32 %v574, 16
        %v723 = vrot.slane %v721, 1
        %v724 = vshll.u32 %v574, 16
        %v726 = vrot.slane %v724, 2
        %v727 = vor.u32 %v723, %v726
        %v728 = vsel %vm638, %v705, %v727
        %v729 = vrot.slane %v527, 1
        %v730 = vrot.slane %v523, 2
        %v731 = vor.u32 %v729, %v730
        %v732 = vsel %vm638, %v709, %v731
        %v734 = vshrl.u32 %v534, 16
        %v736 = vrot.slane %v734, 1
        %v737 = vshll.u32 %v534, 16
        %v739 = vrot.slane %v737, 2
        %v740 = vor.u32 %v736, %v739
        %v741 = vsel %vm638, %v718, %v740
        %v743 = vshrl.u32 %v576, 16
        %v745 = vrot.slane %v743, 1
        %v746 = vshll.u32 %v576, 16
        %v748 = vrot.slane %v746, 2
        %v749 = vor.u32 %v745, %v748
        %v750 = vsel %vm638, %v727, %v749
        %v751 = vrot.slane %v535, 1
        %v752 = vrot.slane %v531, 2
        %v753 = vor.u32 %v751, %v752
        %v754 = vsel %vm638, %v731, %v753
        %v756 = vshrl.u32 %v542, 16
        %v758 = vrot.slane %v756, 1
        %v759 = vshll.u32 %v542, 16
        %v761 = vrot.slane %v759, 2
        %v762 = vor.u32 %v758, %v761
        %v763 = vsel %vm638, %v740, %v762
        %v765 = vshrl.u32 %v578, 16
        %v767 = vrot.slane %v765, 1
        %v768 = vshll.u32 %v578, 16
        %v770 = vrot.slane %v768, 2
        %v771 = vor.u32 %v767, %v770
        %v772 = vsel %vm638, %v749, %v771
        %v773 = vrot.slane %v543, 1
        %v774 = vrot.slane %v539, 2
        %v775 = vor.u32 %v773, %v774
        %v776 = vsel %vm638, %v753, %v775
        %v778 = vshrl.u32 %v550, 16
        %v780 = vrot.slane %v778, 1
        %v781 = vshll.u32 %v550, 16
        %v783 = vrot.slane %v781, 2
        %v784 = vor.u32 %v780, %v783
        %v785 = vsel %vm638, %v762, %v784
        %v787 = vshrl.u32 %v580, 16
        %v789 = vrot.slane %v787, 1
        %v790 = vshll.u32 %v580, 16
        %v792 = vrot.slane %v790, 2
        %v793 = vor.u32 %v789, %v792
        %v794 = vsel %vm638, %v771, %v793
        %v795 = vrot.slane %v551, 1
        %v796 = vrot.slane %v547, 2
        %v797 = vor.u32 %v795, %v796
        %v798 = vsel %vm638, %v775, %v797
        %v800 = vshrl.u32 %v558, 16
        %v802 = vrot.slane %v800, 1
        %v803 = vshll.u32 %v558, 16
        %v805 = vrot.slane %v803, 2
        %v806 = vor.u32 %v802, %v805
        %v807 = vsel %vm638, %v784, %v806
        %v809 = vshrl.u32 %v582, 16
        %v811 = vrot.slane %v809, 1
        %v812 = vshll.u32 %v582, 16
        %v814 = vrot.slane %v812, 2
        %v815 = vor.u32 %v811, %v814
        %v816 = vsel %vm638, %v793, %v815
        %v817 = vrot.slane %v559, 1
        %v818 = vrot.slane %v555, 2
        %v819 = vor.u32 %v817, %v818
        %v820 = vsel %vm638, %v797, %v819
        %v822 = vshrl.u32 %v561, 16
        %v824 = vrot.slane %v822, 1
        %v825 = vshll.u32 %v561, 16
        %v827 = vrot.slane %v825, 2
        %v828 = vor.u32 %v824, %v827
        %v829 = vsel %vm638, %v806, %v828
        %v831 = vshrl.u32 %v581, 16
        %v833 = vrot.slane %v831, 1
        %v834 = vshll.u32 %v581, 16
        %v836 = vrot.slane %v834, 2
        %v837 = vor.u32 %v833, %v836
        %v838 = vsel %vm638, %v815, %v837
        %v914 = vunpack.c.l.b16 %v583
        %v915 = vunpack.c.l.b16 %v584
        %v916 = vunpack.c.l.b16 %v585
        %v917 = vunpack.c.l.b16 %v586
        %v918 = vunpack.c.l.b16 %v587
        %v919 = vunpack.c.l.b16 %v588
        %v920 = vunpack.c.l.b16 %v589
        %v921 = vunpack.c.l.b16 %v590
        %v922 = vunpack.c.l.b16 %v591
        %v923 = vunpack.c.l.b16 %v592
        %v924 = vunpack.c.l.b16 %v593
        %v925 = vunpack.c.l.b16 %v594
        %v926 = vunpack.c.l.b16 %v595
        %v927 = vunpack.c.l.b16 %v596
        %v928 = vunpack.c.l.b16 %v597
        %v929 = vunpack.c.l.b16 %v598
        %v930 = vunpack.c.l.b16 %v599
        %v931 = vunpack.c.l.b16 %v600
        %v932 = vunpack.c.l.b16 %v601
        %v933 = vunpack.c.l.b16 %v602
        %v934 = vunpack.c.l.b16 %v603
        %v935 = vunpack.c.l.b16 %v604
        %v936 = vunpack.c.l.b16 %v605
        %v937 = vunpack.c.l.b16 %v606
        %v938 = vunpack.c.l.b16 %v607
        %v939 = vunpack.c.l.b16 %v608
        %v940 = vunpack.c.l.b16 %v609
        %v941 = vunpack.c.l.b16 %v610
        %v942 = vunpack.c.l.b16 %v611
        %v943 = vunpack.c.l.b16 %v612
        %v944 = vunpack.c.l.b16 %v613
        %v945 = vunpack.c.l.b16 %v614
        %v946 = vunpack.c.l.b16 %v615
        %v947 = vunpack.c.l.b16 %v616
        %v948 = vunpack.c.l.b16 %v617
        %v949 = vunpack.c.l.b16 %v618
        %v950 = vunpack.c.l.b16 %v619
        %v951 = vunpack.c.l.b16 %v620
        %v952 = vunpack.c.l.b16 %v621
        %v953 = vunpack.c.l.b16 %v622
        %v954 = vunpack.c.l.b16 %v623
        %v955 = vunpack.c.l.b16 %v624
        %v956 = vunpack.c.l.b16 %v625
        %v957 = vunpack.c.l.b16 %v626
        %v958 = vunpack.c.l.b16 %v627
        %v959 = vunpack.c.l.b16 %v628
        %v960 = vunpack.c.l.b16 %v629
        %v961 = vunpack.c.l.b16 %v630
        %v962 = vpack.c.b16 %v915, %v914
        %v963 = vpack.c.b16 %v917, %v916
        %v964 = vpack.c.b16 %v919, %v918
        %v965 = vpack.c.b16 %v921, %v920
        %v966 = vpack.c.b16 %v923, %v922
        %v967 = vpack.c.b16 %v925, %v924
        %v968 = vpack.c.b16 %v927, %v926
        %v969 = vpack.c.b16 %v929, %v928
        %v970 = vpack.c.b16 %v931, %v930
        %v971 = vpack.c.b16 %v933, %v932
        %v972 = vpack.c.b16 %v935, %v934
        %v973 = vpack.c.b16 %v937, %v936
        %v974 = vpack.c.b16 %v939, %v938
        %v975 = vpack.c.b16 %v941, %v940
        %v976 = vpack.c.b16 %v943, %v942
        %v977 = vpack.c.b16 %v945, %v944
        %v978 = vpack.c.b16 %v947, %v946
        %v979 = vpack.c.b16 %v949, %v948
        %v980 = vpack.c.b16 %v951, %v950
        %v981 = vpack.c.b16 %v953, %v952
        %v982 = vpack.c.b16 %v955, %v954
        %v983 = vpack.c.b16 %v957, %v956
        %v984 = vpack.c.b16 %v959, %v958
        %v985 = vpack.c.b16 %v961, %v960
        %1010 = vmatprep.subr.bf16.mxu0 0
        %1011 = vmatpush1.bf16.msra.mxu0 %v969
        %1012 = vmatprep.subr.bf16.mxu0 0
        %1013 = vmatpush1.bf16.msra.mxu0 %v968
        %1014 = vmatprep.subr.bf16.mxu0 0
        %1015 = vmatpush1.bf16.msra.mxu0 %v967
        %1016 = vmatprep.subr.bf16.mxu0 0
        %1017 = vmatpush1.bf16.msra.mxu0 %v966
        %1018 = vmatprep.subr.bf16.mxu0 0
        %1019 = vmatpush1.bf16.msra.mxu0 %v965
        %1020 = vmatprep.subr.bf16.mxu0 0
        %1021 = vmatpush1.bf16.msra.mxu0 %v964
        %1022 = vmatprep.subr.bf16.mxu0 0
        %1023 = vmatpush1.bf16.msra.mxu0 %v963
        %1024 = vmatprep.subr.bf16.mxu0 0
        %1025 = vmatpush1.bf16.msra.mxu0 %v962
        %1026 = vmatprep.subr.bf16.mxu0 0
        %1027 = vmatpush2.bf16.msra.mxu0 %v977
        %1028 = vmatprep.subr.bf16.mxu0 0
        %1029 = vmatpush2.bf16.msra.mxu0 %v976
        %1030 = vmatprep.subr.bf16.mxu0 0
        %1031 = vmatpush2.bf16.msra.mxu0 %v975
        %1032 = vmatprep.subr.bf16.mxu0 0
        %1033 = vmatpush2.bf16.msra.mxu0 %v974
        %1034 = vmatprep.subr.bf16.mxu0 0
        %1035 = vmatpush2.bf16.msra.mxu0 %v973
        %1036 = vmatprep.subr.bf16.mxu0 0
        %1037 = vmatpush2.bf16.msra.mxu0 %v972
        %1038 = vmatprep.subr.bf16.mxu0 0
        %1039 = vmatpush2.bf16.msra.mxu0 %v971
        %1040 = vmatprep.subr.bf16.mxu0 0
        %1041 = vmatpush2.bf16.msra.mxu0 %v970
        %1042 = vmatprep.mubr.bf16.mxu0 %v667
        %1043 = vmatmul.mubr.bf16.gmra.mxu0 %v650
        %v1044 = vpop.f32.mrf.mxu0
        %v1045 = vadd.f32 %v636, %v1044
        %v1046 = vpop.f32.mrf.mxu0
        %v1047 = vpop.f32.mrf.mxu0
        %v1048 = vadd.f32 %v636, %v1047
        %v1049 = vpop.f32.mrf.mxu0
        %1050 = vmatprep.mubr.bf16.mxu0 %v697
        %1051 = vmatmul.mubr.bf16.gmra.mxu0 %v688
        %v1052 = vpop.f32.mrf.mxu0
        %v1053 = vadd.f32 %v636, %v1052
        %v1054 = vpop.f32.mrf.mxu0
        %v1055 = vpop.f32.mrf.mxu0
        %v1056 = vadd.f32 %v636, %v1055
        %v1057 = vpop.f32.mrf.mxu0
        %1058 = vmatprep.mubr.bf16.mxu0 %v719
        %1059 = vmatmul.mubr.bf16.gmra.mxu0 %v710
        %v1060 = vpop.f32.mrf.mxu0
        %v1061 = vadd.f32 %v636, %v1060
        %v1062 = vpop.f32.mrf.mxu0
        %v1063 = vpop.f32.mrf.mxu0
        %v1064 = vadd.f32 %v636, %v1063
        %v1065 = vpop.f32.mrf.mxu0
        %1066 = vmatprep.mubr.bf16.mxu0 %v741
        %1067 = vmatmul.mubr.bf16.gmra.mxu0 %v732
        %v1068 = vpop.f32.mrf.mxu0
        %v1069 = vadd.f32 %v636, %v1068
        %v1070 = vpop.f32.mrf.mxu0
        %v1071 = vpop.f32.mrf.mxu0
        %v1072 = vadd.f32 %v636, %v1071
        %v1073 = vpop.f32.mrf.mxu0
        %1074 = vmatprep.mubr.bf16.mxu0 %v763
        %1075 = vmatmul.mubr.bf16.gmra.mxu0 %v754
        %v1076 = vpop.f32.mrf.mxu0
        %v1077 = vadd.f32 %v636, %v1076
        %v1078 = vpop.f32.mrf.mxu0
        %v1079 = vpop.f32.mrf.mxu0
        %v1080 = vadd.f32 %v636, %v1079
        %v1081 = vpop.f32.mrf.mxu0
        %1082 = vmatprep.mubr.bf16.mxu0 %v785
        %1083 = vmatmul.mubr.bf16.gmra.mxu0 %v776
        %v1084 = vpop.f32.mrf.mxu0
        %v1085 = vadd.f32 %v636, %v1084
        %v1086 = vpop.f32.mrf.mxu0
        %v1087 = vpop.f32.mrf.mxu0
        %v1088 = vadd.f32 %v636, %v1087
        %v1089 = vpop.f32.mrf.mxu0
        %1090 = vmatprep.mubr.bf16.mxu0 %v807
        %1091 = vmatmul.mubr.bf16.gmra.mxu0 %v798
        %v1092 = vpop.f32.mrf.mxu0
        %v1093 = vadd.f32 %v636, %v1092
        %v1094 = vpop.f32.mrf.mxu0
        %v1095 = vpop.f32.mrf.mxu0
        %v1096 = vadd.f32 %v636, %v1095
        %v1097 = vpop.f32.mrf.mxu0
        %1098 = vmatprep.mubr.bf16.mxu0 %v829
        %1099 = vmatmul.mubr.bf16.gmra.mxu0 %v820
        %v1100 = vpop.f32.mrf.mxu0
        %v1101 = vadd.f32 %v636, %v1100
        %v1102 = vpop.f32.mrf.mxu0
        %v1103 = vpop.f32.mrf.mxu0
        %v1104 = vadd.f32 %v636, %v1103
        %v1105 = vpop.f32.mrf.mxu0
        %1106 = vmatprep.mubr.bf16.mxu0 %v828
        %1107 = vmatmul.mubr.bf16.gmra.mxu0 %v819
        %v1108 = vpop.f32.mrf.mxu0
        %v1109 = vadd.f32 %v636, %v1108
        %v1110 = vpop.f32.mrf.mxu0
        %v1111 = vpop.f32.mrf.mxu0
        %v1112 = vpop.f32.mrf.mxu0
        %1113 = vdwg.mxu0
        %1114 = vmatprep.subr.bf16.mxu0 0
        %1115 = vmatpush1.bf16.msra.mxu0 %v985
        %1116 = vmatprep.subr.bf16.mxu0 0
        %1117 = vmatpush1.bf16.msra.mxu0 %v984
        %1118 = vmatprep.subr.bf16.mxu0 0
        %1119 = vmatpush1.bf16.msra.mxu0 %v983
        %1120 = vmatprep.subr.bf16.mxu0 0
        %1121 = vmatpush1.bf16.msra.mxu0 %v982
        %1122 = vmatprep.subr.bf16.mxu0 0
        %1123 = vmatpush1.bf16.msra.mxu0 %v981
        %1124 = vmatprep.subr.bf16.mxu0 0
        %1125 = vmatpush1.bf16.msra.mxu0 %v980
        %1126 = vmatprep.subr.bf16.mxu0 0
        %1127 = vmatpush1.bf16.msra.mxu0 %v979
        %1128 = vmatprep.subr.bf16.mxu0 0
        %1129 = vmatpush1.bf16.msra.mxu0 %v978
        %1130 = vmatprep.subr.bf16.mxu0 0
        %1131 = vmatpush2.bf16.msra.mxu0 0
        %1132 = vmatprep.subr.bf16.mxu0 0
        %1133 = vmatpush2.bf16.msra.mxu0 0
        %1134 = vmatprep.subr.bf16.mxu0 0
        %1135 = vmatpush2.bf16.msra.mxu0 0
        %1136 = vmatprep.subr.bf16.mxu0 0
        %1137 = vmatpush2.bf16.msra.mxu0 0
        %1138 = vmatprep.subr.bf16.mxu0 0
        %1139 = vmatpush2.bf16.msra.mxu0 0
        %1140 = vmatprep.subr.bf16.mxu0 0
        %1141 = vmatpush2.bf16.msra.mxu0 0
        %1142 = vmatprep.subr.bf16.mxu0 0
        %1143 = vmatpush2.bf16.msra.mxu0 0
        %1144 = vmatprep.subr.bf16.mxu0 0
        %1145 = vmatpush2.bf16.msra.mxu0 0
        %1146 = vmatprep.mubr.bf16.mxu0 0
        %1147 = vmatmul.mubr.bf16.gmra.mxu0 %v684
        %v1148 = vpop.f32.mrf.mxu0
        %v1149 = vadd.f32 %v1045, %v1148
        %v1150 = vpop.f32.mrf.mxu0
        %v1151 = vpop.f32.mrf.mxu0
        %v1152 = vadd.f32 %v1048, %v1151
        %v1153 = vpop.f32.mrf.mxu0
        %1154 = vmatprep.mubr.bf16.mxu0 0
        %1155 = vmatmul.mubr.bf16.gmra.mxu0 %v706
        %v1156 = vpop.f32.mrf.mxu0
        %v1157 = vadd.f32 %v1053, %v1156
        %v1158 = vpop.f32.mrf.mxu0
        %v1159 = vpop.f32.mrf.mxu0
        %v1160 = vadd.f32 %v1056, %v1159
        %v1161 = vpop.f32.mrf.mxu0
        %1162 = vmatprep.mubr.bf16.mxu0 0
        %1163 = vmatmul.mubr.bf16.gmra.mxu0 %v728
        %v1164 = vpop.f32.mrf.mxu0
        %v1165 = vadd.f32 %v1061, %v1164
        %v1166 = vpop.f32.mrf.mxu0
        %v1167 = vpop.f32.mrf.mxu0
        %v1168 = vadd.f32 %v1064, %v1167
        %v1169 = vpop.f32.mrf.mxu0
        %1170 = vmatprep.mubr.bf16.mxu0 0
        %1171 = vmatmul.mubr.bf16.gmra.mxu0 %v750
        %v1172 = vpop.f32.mrf.mxu0
        %v1173 = vadd.f32 %v1069, %v1172
        %v1174 = vpop.f32.mrf.mxu0
        %v1175 = vpop.f32.mrf.mxu0
        %v1176 = vadd.f32 %v1072, %v1175
        %v1177 = vpop.f32.mrf.mxu0
        %1178 = vmatprep.mubr.bf16.mxu0 0
        %1179 = vmatmul.mubr.bf16.gmra.mxu0 %v772
        %v1180 = vpop.f32.mrf.mxu0
        %v1181 = vadd.f32 %v1077, %v1180
        %v1182 = vpop.f32.mrf.mxu0
        %v1183 = vpop.f32.mrf.mxu0
        %v1184 = vadd.f32 %v1080, %v1183
        %v1185 = vpop.f32.mrf.mxu0
        %1186 = vmatprep.mubr.bf16.mxu0 0
        %1187 = vmatmul.mubr.bf16.gmra.mxu0 %v794
        %v1188 = vpop.f32.mrf.mxu0
        %v1189 = vadd.f32 %v1085, %v1188
        %v1190 = vpop.f32.mrf.mxu0
        %v1191 = vpop.f32.mrf.mxu0
        %v1192 = vadd.f32 %v1088, %v1191
        %v1193 = vpop.f32.mrf.mxu0
        %1194 = vmatprep.mubr.bf16.mxu0 0
        %1195 = vmatmul.mubr.bf16.gmra.mxu0 %v816
        %v1196 = vpop.f32.mrf.mxu0
        %v1197 = vadd.f32 %v1093, %v1196
        %v1198 = vpop.f32.mrf.mxu0
        %v1199 = vpop.f32.mrf.mxu0
        %v1200 = vadd.f32 %v1096, %v1199
        %v1201 = vpop.f32.mrf.mxu0
        %1202 = vmatprep.mubr.bf16.mxu0 0
        %1203 = vmatmul.mubr.bf16.gmra.mxu0 %v838
        %v1204 = vpop.f32.mrf.mxu0
        %v1205 = vadd.f32 %v1101, %v1204
        %v1206 = vpop.f32.mrf.mxu0
        %v1207 = vpop.f32.mrf.mxu0
        %v1208 = vadd.f32 %v1104, %v1207
        %v1209 = vpop.f32.mrf.mxu0
        %1210 = vmatprep.mubr.bf16.mxu0 0
        %1211 = vmatmul.mubr.bf16.gmra.mxu0 %v837
        %v1212 = vpop.f32.mrf.mxu0
        %v1213 = vadd.f32 %v1109, %v1212
        %v1214 = vpop.f32.mrf.mxu0
        %v1215 = vpop.f32.mrf.mxu0
        %v1216 = vpop.f32.mrf.mxu0
        %1217 = vdwg.mxu0
        %vm1236 = vcmask 1043456
        %v1237 = vrot.slane %v278, 4
        %v1238 = vrot.slane %v279, 4
        %v1239 = vsel %vm1236, %v1237, %v1238
        %v1240 = vrot.slane %v280, 4
        %v1241 = vsel %vm1236, %v1238, %v1240
        %v1242 = vrot.slane %v281, 4
        %v1243 = vsel %vm1236, %v1240, %v1242
        %v1244 = vrot.slane %v282, 4
        %v1245 = vsel %vm1236, %v1242, %v1244
        %v1246 = vrot.slane %v283, 4
        %v1247 = vsel %vm1236, %v1244, %v1246
        %v1248 = vrot.slane %v284, 4
        %v1249 = vsel %vm1236, %v1246, %v1248
        %v1250 = vrot.slane %v285, 4
        %v1251 = vsel %vm1236, %v1248, %v1250
        %v1252 = vrot.slane %v286, 4
        %v1253 = vsel %vm1236, %v1250, %v1252
        %v1254 = vrot.slane %v287, 4
        %v1255 = vsel %vm1236, %v1252, %v1254
        %v1256 = vrot.slane %v288, 4
        %v1257 = vsel %vm1236, %v1254, %v1256
        %v1258 = vrot.slane %v289, 4
        %v1259 = vsel %vm1236, %v1256, %v1258
        %v1260 = vrot.slane %v290, 4
        %v1261 = vsel %vm1236, %v1258, %v1260
        %v1262 = vrot.slane %v291, 4
        %v1263 = vsel %vm1236, %v1260, %v1262
        %v1264 = vrot.slane %v292, 4
        %v1265 = vsel %vm1236, %v1262, %v1264
        %v1266 = vrot.slane %v293, 4
        %v1267 = vsel %vm1236, %v1264, %v1266
        %v1268 = vrot.slane %v294, 4
        %v1269 = vsel %vm1236, %v1266, %v1268
        %v1270 = vrot.slane %v295, 4
        %v1271 = vsel %vm1236, %v1268, %v1270
        %v1289 = vadd.f32 %v1149, %v1239
        %v1290 = vadd.f32 %v1152, %v1241
        %v1291 = vadd.f32 %v1157, %v1243
        %v1292 = vadd.f32 %v1160, %v1245
        %v1293 = vadd.f32 %v1165, %v1247
        %v1294 = vadd.f32 %v1168, %v1249
        %v1295 = vadd.f32 %v1173, %v1251
        %v1296 = vadd.f32 %v1176, %v1253
        %v1297 = vadd.f32 %v1181, %v1255
        %v1298 = vadd.f32 %v1184, %v1257
        %v1299 = vadd.f32 %v1189, %v1259
        %v1300 = vadd.f32 %v1192, %v1261
        %v1301 = vadd.f32 %v1197, %v1263
        %v1302 = vadd.f32 %v1200, %v1265
        %v1303 = vadd.f32 %v1205, %v1267
        %v1304 = vadd.f32 %v1208, %v1269
        %v1305 = vadd.f32 %v1213, %v1271
        %1306 = vst [vmem:[#allocation5] sm:$0xff] %v1289
        %1307 = vst [vmem:[#allocation5 + $0x8] sm:$0xff] %v1290
        %1308 = vst [vmem:[#allocation5 + $0x10] sm:$0xff] %v1291
        %1309 = vst [vmem:[#allocation5 + $0x18] sm:$0xff] %v1292
        %1310 = vst [vmem:[#allocation5 + $0x20] sm:$0xff] %v1293
        %1311 = vst [vmem:[#allocation5 + $0x28] sm:$0xff] %v1294
        %1312 = vst [vmem:[#allocation5 + $0x30] sm:$0xff] %v1295
        %1313 = vst [vmem:[#allocation5 + $0x38] sm:$0xff] %v1296
        %1314 = vst [vmem:[#allocation5 + $0x40] sm:$0xff] %v1297
        %1315 = vst [vmem:[#allocation5 + $0x48] sm:$0xff] %v1298
        %1316 = vst [vmem:[#allocation5 + $0x50] sm:$0xff] %v1299
        %1317 = vst [vmem:[#allocation5 + $0x58] sm:$0xff] %v1300
        %1318 = vst [vmem:[#allocation5 + $0x60] sm:$0xff] %v1301
        %1319 = vst [vmem:[#allocation5 + $0x68] sm:$0xff] %v1302
        %1320 = vst [vmem:[#allocation5 + $0x70] sm:$0xff] %v1303
        %1321 = vst [vmem:[#allocation5 + $0x78] sm:$0xff] %v1304
        %1322 = vst [vmem:[#allocation5 + $0x80] sm:$0xff] %v1305
        %s1323 = smul.u32 %s26, 128
        %s1324 = ssub.s32 %s1323, 4
        %p1325 = scmp.lt.s32.totalorder %s1324, 0
        %s1326 = sadd.s32 %s1323, 132
        %p1327 = scmp.gt.s32.totalorder %s1326, 197
        %p1328 = por %p1325, %p1327
        // Predicated region
        $region61: #{tpu_custom_call.1} parent=35 // pred_check
          %p1329 = pneg %p1328
        $region62: #{tpu_custom_call.1} parent=35 // pred_check_branch
          %1331 = sbr.rel (%p1329) target = $region64
        $region63: #{tpu_custom_call.1} parent=35 // pred_region
          %v1332 = vlaneseq
          %v1333 = vshrl.u32 %v1332, 7
          %v1334 = vadd.s32 %v1333, 8
          %v1335 = vadd.s32 %v1333, 16
          %v1336 = vadd.s32 %v1333, 24
          %v1337 = vadd.s32 %v1333, 32
          %v1338 = vadd.s32 %v1333, 40
          %v1339 = vadd.s32 %v1333, 48
          %v1340 = vadd.s32 %v1333, 56
          %v1341 = vadd.s32 %v1333, 64
          %v1342 = vadd.s32 %v1333, 72
          %v1343 = vadd.s32 %v1333, 80
          %v1344 = vadd.s32 %v1333, 88
          %v1345 = vadd.s32 %v1333, 96
          %v1346 = vadd.s32 %v1333, 104
          %v1347 = vadd.s32 %v1333, 112
          %v1348 = vadd.s32 %v1333, 120
          %v1349 = vadd.s32 %v1333, 128
          %v1350 = vstv %s1324
          %v1351 = vadd.s32 %v1350, %v1333
          %v1352 = vadd.s32 %v1350, %v1334
          %v1353 = vadd.s32 %v1350, %v1335
          %v1354 = vadd.s32 %v1350, %v1336
          %v1355 = vadd.s32 %v1350, %v1337
          %v1356 = vadd.s32 %v1350, %v1338
          %v1357 = vadd.s32 %v1350, %v1339
          %v1358 = vadd.s32 %v1350, %v1340
          %v1359 = vadd.s32 %v1350, %v1341
          %v1360 = vadd.s32 %v1350, %v1342
          %v1361 = vadd.s32 %v1350, %v1343
          %v1362 = vadd.s32 %v1350, %v1344
          %v1363 = vadd.s32 %v1350, %v1345
          %v1364 = vadd.s32 %v1350, %v1346
          %v1365 = vadd.s32 %v1350, %v1347
          %v1366 = vadd.s32 %v1350, %v1348
          %v1367 = vadd.s32 %v1350, %v1349
          %vm1368 = vcmp.ge.s32.totalorder %v1351, 0
          %vm1369 = vcmp.ge.s32.totalorder %v1352, 0
          %vm1370 = vcmp.ge.s32.totalorder %v1353, 0
          %vm1371 = vcmp.ge.s32.totalorder %v1354, 0
          %vm1372 = vcmp.ge.s32.totalorder %v1355, 0
          %vm1373 = vcmp.ge.s32.totalorder %v1356, 0
          %vm1374 = vcmp.ge.s32.totalorder %v1357, 0
          %vm1375 = vcmp.ge.s32.totalorder %v1358, 0
          %vm1376 = vcmp.ge.s32.totalorder %v1359, 0
          %vm1377 = vcmp.ge.s32.totalorder %v1360, 0
          %vm1378 = vcmp.ge.s32.totalorder %v1361, 0
          %vm1379 = vcmp.ge.s32.totalorder %v1362, 0
          %vm1380 = vcmp.ge.s32.totalorder %v1363, 0
          %vm1381 = vcmp.ge.s32.totalorder %v1364, 0
          %vm1382 = vcmp.ge.s32.totalorder %v1365, 0
          %vm1383 = vcmp.ge.s32.totalorder %v1366, 0
          %vm1384 = vcmp.ge.s32.totalorder %v1367, 0
          %vm1385 = vcmp.lt.s32.totalorder %v1351, 197
          %vm1386 = vcmp.lt.s32.totalorder %v1352, 197
          %vm1387 = vcmp.lt.s32.totalorder %v1353, 197
          %vm1388 = vcmp.lt.s32.totalorder %v1354, 197
          %vm1389 = vcmp.lt.s32.totalorder %v1355, 197
          %vm1390 = vcmp.lt.s32.totalorder %v1356, 197
          %vm1391 = vcmp.lt.s32.totalorder %v1357, 197
          %vm1392 = vcmp.lt.s32.totalorder %v1358, 197
          %vm1393 = vcmp.lt.s32.totalorder %v1359, 197
          %vm1394 = vcmp.lt.s32.totalorder %v1360, 197
          %vm1395 = vcmp.lt.s32.totalorder %v1361, 197
          %vm1396 = vcmp.lt.s32.totalorder %v1362, 197
          %vm1397 = vcmp.lt.s32.totalorder %v1363, 197
          %vm1398 = vcmp.lt.s32.totalorder %v1364, 197
          %vm1399 = vcmp.lt.s32.totalorder %v1365, 197
          %vm1400 = vcmp.lt.s32.totalorder %v1366, 197
          %vm1401 = vcmp.lt.s32.totalorder %v1367, 197
          %vm1402 = vmand %vm1368, %vm1385
          %vm1403 = vmand %vm1369, %vm1386
          %vm1404 = vmand %vm1370, %vm1387
          %vm1405 = vmand %vm1371, %vm1388
          %vm1406 = vmand %vm1372, %vm1389
          %vm1407 = vmand %vm1373, %vm1390
          %vm1408 = vmand %vm1374, %vm1391
          %vm1409 = vmand %vm1375, %vm1392
          %vm1410 = vmand %vm1376, %vm1393
          %vm1411 = vmand %vm1377, %vm1394
          %vm1412 = vmand %vm1378, %vm1395
          %vm1413 = vmand %vm1379, %vm1396
          %vm1414 = vmand %vm1380, %vm1397
          %vm1415 = vmand %vm1381, %vm1398
          %vm1416 = vmand %vm1382, %vm1399
          %vm1417 = vmand %vm1383, %vm1400
          %vm1418 = vmand %vm1384, %vm1401
          %v1419 = vld [vmem:[#allocation5] sm:$0xff]
          %v1420 = vld [vmem:[#allocation5 + $0x8] sm:$0xff]
          %v1421 = vld [vmem:[#allocation5 + $0x10] sm:$0xff]
          %v1422 = vld [vmem:[#allocation5 + $0x18] sm:$0xff]
          %v1423 = vld [vmem:[#allocation5 + $0x20] sm:$0xff]
          %v1424 = vld [vmem:[#allocation5 + $0x28] sm:$0xff]
          %v1425 = vld [vmem:[#allocation5 + $0x30] sm:$0xff]
          %v1426 = vld [vmem:[#allocation5 + $0x38] sm:$0xff]
          %v1427 = vld [vmem:[#allocation5 + $0x40] sm:$0xff]
          %v1428 = vld [vmem:[#allocation5 + $0x48] sm:$0xff]
          %v1429 = vld [vmem:[#allocation5 + $0x50] sm:$0xff]
          %v1430 = vld [vmem:[#allocation5 + $0x58] sm:$0xff]
          %v1431 = vld [vmem:[#allocation5 + $0x60] sm:$0xff]
          %v1432 = vld [vmem:[#allocation5 + $0x68] sm:$0xff]
          %v1433 = vld [vmem:[#allocation5 + $0x70] sm:$0xff]
          %v1434 = vld [vmem:[#allocation5 + $0x78] sm:$0xff]
          %v1435 = vld [vmem:[#allocation5 + $0x80] sm:$0xff]
          %v1436 = vsel %vm1402, 1, 0
          %v1437 = vsel %vm1403, 1, 0
          %v1438 = vsel %vm1404, 1, 0
          %v1439 = vsel %vm1405, 1, 0
          %v1440 = vsel %vm1406, 1, 0
          %v1441 = vsel %vm1407, 1, 0
          %v1442 = vsel %vm1408, 1, 0
          %v1443 = vsel %vm1409, 1, 0
          %v1444 = vsel %vm1410, 1, 0
          %v1445 = vsel %vm1411, 1, 0
          %v1446 = vsel %vm1412, 1, 0
          %v1447 = vsel %vm1413, 1, 0
          %v1448 = vsel %vm1414, 1, 0
          %v1449 = vsel %vm1415, 1, 0
          %v1450 = vsel %vm1416, 1, 0
          %v1451 = vsel %vm1417, 1, 0
          %v1452 = vsel %vm1418, 1, 0
          %vm1453 = vcmp.eq.s32.totalorder %v1436, 1
          %vm1454 = vcmp.eq.s32.totalorder %v1437, 1
          %vm1455 = vcmp.eq.s32.totalorder %v1438, 1
          %vm1456 = vcmp.eq.s32.totalorder %v1439, 1
          %vm1457 = vcmp.eq.s32.totalorder %v1440, 1
          %vm1458 = vcmp.eq.s32.totalorder %v1441, 1
          %vm1459 = vcmp.eq.s32.totalorder %v1442, 1
          %vm1460 = vcmp.eq.s32.totalorder %v1443, 1
          %vm1461 = vcmp.eq.s32.totalorder %v1444, 1
          %vm1462 = vcmp.eq.s32.totalorder %v1445, 1
          %vm1463 = vcmp.eq.s32.totalorder %v1446, 1
          %vm1464 = vcmp.eq.s32.totalorder %v1447, 1
          %vm1465 = vcmp.eq.s32.totalorder %v1448, 1
          %vm1466 = vcmp.eq.s32.totalorder %v1449, 1
          %vm1467 = vcmp.eq.s32.totalorder %v1450, 1
          %vm1468 = vcmp.eq.s32.totalorder %v1451, 1
          %vm1469 = vcmp.eq.s32.totalorder %v1452, 1
          %v1470 = vsel %vm1453, %v1419, 0.0
          %v1471 = vsel %vm1454, %v1420, 0.0
          %v1472 = vsel %vm1455, %v1421, 0.0
          %v1473 = vsel %vm1456, %v1422, 0.0
          %v1474 = vsel %vm1457, %v1423, 0.0
          %v1475 = vsel %vm1458, %v1424, 0.0
          %v1476 = vsel %vm1459, %v1425, 0.0
          %v1477 = vsel %vm1460, %v1426, 0.0
          %v1478 = vsel %vm1461, %v1427, 0.0
          %v1479 = vsel %vm1462, %v1428, 0.0
          %v1480 = vsel %vm1463, %v1429, 0.0
          %v1481 = vsel %vm1464, %v1430, 0.0
          %v1482 = vsel %vm1465, %v1431, 0.0
          %v1483 = vsel %vm1466, %v1432, 0.0
          %v1484 = vsel %vm1467, %v1433, 0.0
          %v1485 = vsel %vm1468, %v1434, 0.0
          %v1486 = vsel %vm1469, %v1435, 0.0
          %1487 = vst [vmem:[#allocation5] sm:$0xff] %v1470
          %1488 = vst [vmem:[#allocation5 + $0x8] sm:$0xff] %v1471
          %1489 = vst [vmem:[#allocation5 + $0x10] sm:$0xff] %v1472
          %1490 = vst [vmem:[#allocation5 + $0x18] sm:$0xff] %v1473
          %1491 = vst [vmem:[#allocation5 + $0x20] sm:$0xff] %v1474
          %1492 = vst [vmem:[#allocation5 + $0x28] sm:$0xff] %v1475
          %1493 = vst [vmem:[#allocation5 + $0x30] sm:$0xff] %v1476
          %1494 = vst [vmem:[#allocation5 + $0x38] sm:$0xff] %v1477
          %1495 = vst [vmem:[#allocation5 + $0x40] sm:$0xff] %v1478
          %1496 = vst [vmem:[#allocation5 + $0x48] sm:$0xff] %v1479
          %1497 = vst [vmem:[#allocation5 + $0x50] sm:$0xff] %v1480
          %1498 = vst [vmem:[#allocation5 + $0x58] sm:$0xff] %v1481
          %1499 = vst [vmem:[#allocation5 + $0x60] sm:$0xff] %v1482
          %1500 = vst [vmem:[#allocation5 + $0x68] sm:$0xff] %v1483
          %1501 = vst [vmem:[#allocation5 + $0x70] sm:$0xff] %v1484
          %1502 = vst [vmem:[#allocation5 + $0x78] sm:$0xff] %v1485
          %1503 = vst [vmem:[#allocation5 + $0x80] sm:$0xff] %v1486
        $region64: #{tpu_custom_call.1} parent=35 // pred_fallthru
          _
        %v1504 = vld [vmem:[#allocation5] sm:$0xff]
        %v1505 = vld [vmem:[#allocation5 + $0x8] sm:$0xff]
        %v1506 = vld [vmem:[#allocation5 + $0x10] sm:$0xff]
        %v1507 = vld [vmem:[#allocation5 + $0x18] sm:$0xff]
        %v1508 = vld [vmem:[#allocation5 + $0x20] sm:$0xff]
        %v1509 = vld [vmem:[#allocation5 + $0x28] sm:$0xff]
        %v1510 = vld [vmem:[#allocation5 + $0x30] sm:$0xff]
        %v1511 = vld [vmem:[#allocation5 + $0x38] sm:$0xff]
        %v1512 = vld [vmem:[#allocation5 + $0x40] sm:$0xff]
        %v1513 = vld [vmem:[#allocation5 + $0x48] sm:$0xff]
        %v1514 = vld [vmem:[#allocation5 + $0x50] sm:$0xff]
        %v1515 = vld [vmem:[#allocation5 + $0x58] sm:$0xff]
        %v1516 = vld [vmem:[#allocation5 + $0x60] sm:$0xff]
        %v1517 = vld [vmem:[#allocation5 + $0x68] sm:$0xff]
        %v1518 = vld [vmem:[#allocation5 + $0x70] sm:$0xff]
        %v1519 = vld [vmem:[#allocation5 + $0x78] sm:$0xff]
        %v1520 = vld [vmem:[#allocation5 + $0x80] sm:$0xff]
        %v1521 = vmul.f32 %v1504, 0.1
        %v1522 = vmul.f32 %v1505, 0.1
        %v1523 = vmul.f32 %v1506, 0.1
        %v1524 = vmul.f32 %v1507, 0.1
        %v1525 = vmul.f32 %v1508, 0.1
        %v1526 = vmul.f32 %v1509, 0.1
        %v1527 = vmul.f32 %v1510, 0.1
        %v1528 = vmul.f32 %v1511, 0.1
        %v1529 = vmul.f32 %v1512, 0.1
        %v1530 = vmul.f32 %v1513, 0.1
        %v1531 = vmul.f32 %v1514, 0.1
        %v1532 = vmul.f32 %v1515, 0.1
        %v1533 = vmul.f32 %v1516, 0.1
        %v1534 = vmul.f32 %v1517, 0.1
        %v1535 = vmul.f32 %v1518, 0.1
        %v1536 = vmul.f32 %v1519, 0.1
        %v1537 = vmul.f32 %v1520, 0.1
        %v1538 = vmax.f32 %v1504, %v1521
        %v1539 = vmax.f32 %v1505, %v1522
        %v1540 = vmax.f32 %v1506, %v1523
        %v1541 = vmax.f32 %v1507, %v1524
        %v1542 = vmax.f32 %v1508, %v1525
        %v1543 = vmax.f32 %v1509, %v1526
        %v1544 = vmax.f32 %v1510, %v1527
        %v1545 = vmax.f32 %v1511, %v1528
        %v1546 = vmax.f32 %v1512, %v1529
        %v1547 = vmax.f32 %v1513, %v1530
        %v1548 = vmax.f32 %v1514, %v1531
        %v1549 = vmax.f32 %v1515, %v1532
        %v1550 = vmax.f32 %v1516, %v1533
        %v1551 = vmax.f32 %v1517, %v1534
        %v1552 = vmax.f32 %v1518, %v1535
        %v1553 = vmax.f32 %v1519, %v1536
        %v1554 = vmax.f32 %v1520, %v1537
        %v1555 = vpack.c.bf16 %v1539, %v1538
        %v1556 = vpack.c.bf16 %v1541, %v1540
        %v1557 = vpack.c.bf16 %v1543, %v1542
        %v1558 = vpack.c.bf16 %v1545, %v1544
        %v1559 = vpack.c.bf16 %v1547, %v1546
        %v1560 = vpack.c.bf16 %v1549, %v1548
        %v1561 = vpack.c.bf16 %v1551, %v1550
        %v1562 = vpack.c.bf16 %v1553, %v1552
        %v1563 = vpack.c.bf16 %v1554, %v1554
        %v1573 = vunpack.c.l.b16 %v1555
        %v1574 = vunpack.c.h.b16 %v1555
        %v1575 = vunpack.c.l.b16 %v1556
        %v1576 = vunpack.c.h.b16 %v1556
        %v1577 = vunpack.c.l.b16 %v1557
        %v1578 = vunpack.c.h.b16 %v1557
        %v1579 = vunpack.c.l.b16 %v1558
        %v1580 = vunpack.c.h.b16 %v1558
        %v1581 = vunpack.c.l.b16 %v1559
        %v1582 = vunpack.c.h.b16 %v1559
        %v1583 = vunpack.c.l.b16 %v1560
        %v1584 = vunpack.c.h.b16 %v1560
        %v1585 = vunpack.c.l.b16 %v1561
        %v1586 = vunpack.c.h.b16 %v1561
        %v1587 = vunpack.c.l.b16 %v1562
        %v1588 = vunpack.c.h.b16 %v1562
        %v1589 = vunpack.c.l.b16 %v1563
        %v1590 = vpack.c.b16 %v1573, %v1573
        %v1591 = vpack.c.b16 %v1574, %v1574
        %v1592 = vpack.c.b16 %v1575, %v1575
        %v1593 = vpack.c.b16 %v1576, %v1576
        %v1594 = vpack.c.b16 %v1577, %v1577
        %v1595 = vpack.c.b16 %v1578, %v1578
        %v1596 = vpack.c.b16 %v1579, %v1579
        %v1597 = vpack.c.b16 %v1580, %v1580
        %v1598 = vpack.c.b16 %v1581, %v1581
        %v1599 = vpack.c.b16 %v1582, %v1582
        %v1600 = vpack.c.b16 %v1583, %v1583
        %v1601 = vpack.c.b16 %v1584, %v1584
        %v1602 = vpack.c.b16 %v1585, %v1585
        %v1603 = vpack.c.b16 %v1586, %v1586
        %v1604 = vpack.c.b16 %v1587, %v1587
        %v1605 = vpack.c.b16 %v1588, %v1588
        %v1606 = vpack.c.b16 %v1589, %v1589
        %1624 = vst [vmem:[#allocation4] sm:$0xf] %v1590
        %1625 = vst [vmem:[#allocation4 + $0x4] sm:$0xf] %v1591
        %1626 = vst [vmem:[#allocation4 + $0x8] sm:$0xf] %v1592
        %1627 = vst [vmem:[#allocation4 + $0xc] sm:$0xf] %v1593
        %1628 = vst [vmem:[#allocation4 + $0x10] sm:$0xf] %v1594
        %1629 = vst [vmem:[#allocation4 + $0x14] sm:$0xf] %v1595
        %1630 = vst [vmem:[#allocation4 + $0x18] sm:$0xf] %v1596
        %1631 = vst [vmem:[#allocation4 + $0x1c] sm:$0xf] %v1597
        %1632 = vst [vmem:[#allocation4 + $0x20] sm:$0xf] %v1598
        %1633 = vst [vmem:[#allocation4 + $0x24] sm:$0xf] %v1599
        %1634 = vst [vmem:[#allocation4 + $0x28] sm:$0xf] %v1600
        %1635 = vst [vmem:[#allocation4 + $0x2c] sm:$0xf] %v1601
        %1636 = vst [vmem:[#allocation4 + $0x30] sm:$0xf] %v1602
        %1637 = vst [vmem:[#allocation4 + $0x34] sm:$0xf] %v1603
        %1638 = vst [vmem:[#allocation4 + $0x38] sm:$0xf] %v1604
        %1639 = vst [vmem:[#allocation4 + $0x3c] sm:$0xf] %v1605
        %1640 = vst [vmem:[#allocation4 + $0x40] sm:$0xf] %v1606
        %v1641 = vld [vmem:[#allocation4] sm:$0xf]
        %v1642 = vld [vmem:[#allocation4 + $0x4] sm:$0xf]
        %v1643 = vld [vmem:[#allocation4 + $0x8] sm:$0xf]
        %v1644 = vld [vmem:[#allocation4 + $0xc] sm:$0xf]
        %v1645 = vld [vmem:[#allocation4 + $0x10] sm:$0xf]
        %v1646 = vld [vmem:[#allocation4 + $0x14] sm:$0xf]
        %v1647 = vld [vmem:[#allocation4 + $0x18] sm:$0xf]
        %v1648 = vld [vmem:[#allocation4 + $0x1c] sm:$0xf]
        %v1649 = vld [vmem:[#allocation4 + $0x20] sm:$0xf]
        %v1650 = vld [vmem:[#allocation4 + $0x24] sm:$0xf]
        %v1651 = vld [vmem:[#allocation4 + $0x28] sm:$0xf]
        %v1652 = vld [vmem:[#allocation4 + $0x2c] sm:$0xf]
        %v1653 = vld [vmem:[#allocation4 + $0x30] sm:$0xf]
        %v1654 = vld [vmem:[#allocation4 + $0x34] sm:$0xf]
        %v1655 = vld [vmem:[#allocation4 + $0x38] sm:$0xf]
        %v1656 = vld [vmem:[#allocation4 + $0x3c] sm:$0xf]
        %v1657 = vld [vmem:[#allocation4 + $0x40] sm:$0x1]
        %v1658 = vld [vmem:[#allocation4] sm:$0xc]
        %v1659 = vld [vmem:[#allocation4 + $0x40] sm:$0x3]
        %v1660 = vld [vmem:[#allocation4] sm:$0x8]
        %v1661 = vld [vmem:[#allocation4 + $0x40] sm:$0xf]
        %v1679 = vunpack.c.l.b16 %v1641
        %v1680 = vunpack.c.l.b16 %v1642
        %v1681 = vunpack.c.l.b16 %v1643
        %v1682 = vunpack.c.l.b16 %v1644
        %v1683 = vunpack.c.l.b16 %v1645
        %v1684 = vunpack.c.l.b16 %v1646
        %v1685 = vunpack.c.l.b16 %v1647
        %v1686 = vunpack.c.l.b16 %v1648
        %v1687 = vunpack.c.l.b16 %v1649
        %v1688 = vunpack.c.l.b16 %v1650
        %v1689 = vunpack.c.l.b16 %v1651
        %v1690 = vunpack.c.l.b16 %v1652
        %v1691 = vunpack.c.l.b16 %v1653
        %v1692 = vunpack.c.l.b16 %v1654
        %v1693 = vunpack.c.l.b16 %v1655
        %v1694 = vunpack.c.l.b16 %v1656
        %v1695 = vunpack.c.l.b16 %v1657
        %v1696 = vpack.c.b16 %v1680, %v1679
        %v1697 = vpack.c.b16 %v1682, %v1681
        %v1698 = vpack.c.b16 %v1684, %v1683
        %v1699 = vpack.c.b16 %v1686, %v1685
        %v1700 = vpack.c.b16 %v1688, %v1687
        %v1701 = vpack.c.b16 %v1690, %v1689
        %v1702 = vpack.c.b16 %v1692, %v1691
        %v1703 = vpack.c.b16 %v1694, %v1693
        %v1704 = vpack.c.b16 %v1695, %v1695
        %v1707 = vunpack.c.l.b16 %v1658
        %v1708 = vunpack.c.l.b16 %v1659
        %v1709 = vpack.c.b16 %v1680, %v1707
        %v1710 = vpack.c.b16 %v1708, %v1708
        %v1712 = vshrl.u32 %v1709, 16
        %v1714 = vrot.slane %v1712, 1
        %v1715 = vshll.u32 %v1709, 16
        %v1717 = vrot.slane %v1715, 2
        %v1718 = vor.u32 %v1714, %v1717
        %v1720 = vshrl.u32 %v1697, 16
        %v1722 = vrot.slane %v1720, 1
        %v1723 = vshll.u32 %v1697, 16
        %v1725 = vrot.slane %v1723, 2
        %v1726 = vor.u32 %v1722, %v1725
        %v1727 = vsel %vm638, %v1718, %v1726
        %v1729 = vshrl.u32 %v1698, 16
        %v1731 = vrot.slane %v1729, 1
        %v1732 = vshll.u32 %v1698, 16
        %v1734 = vrot.slane %v1732, 2
        %v1735 = vor.u32 %v1731, %v1734
        %v1736 = vsel %vm638, %v1726, %v1735
        %v1738 = vshrl.u32 %v1699, 16
        %v1740 = vrot.slane %v1738, 1
        %v1741 = vshll.u32 %v1699, 16
        %v1743 = vrot.slane %v1741, 2
        %v1744 = vor.u32 %v1740, %v1743
        %v1745 = vsel %vm638, %v1735, %v1744
        %v1747 = vshrl.u32 %v1700, 16
        %v1749 = vrot.slane %v1747, 1
        %v1750 = vshll.u32 %v1700, 16
        %v1752 = vrot.slane %v1750, 2
        %v1753 = vor.u32 %v1749, %v1752
        %v1754 = vsel %vm638, %v1744, %v1753
        %v1756 = vshrl.u32 %v1701, 16
        %v1758 = vrot.slane %v1756, 1
        %v1759 = vshll.u32 %v1701, 16
        %v1761 = vrot.slane %v1759, 2
        %v1762 = vor.u32 %v1758, %v1761
        %v1763 = vsel %vm638, %v1753, %v1762
        %v1765 = vshrl.u32 %v1702, 16
        %v1767 = vrot.slane %v1765, 1
        %v1768 = vshll.u32 %v1702, 16
        %v1770 = vrot.slane %v1768, 2
        %v1771 = vor.u32 %v1767, %v1770
        %v1772 = vsel %vm638, %v1762, %v1771
        %v1774 = vshrl.u32 %v1703, 16
        %v1776 = vrot.slane %v1774, 1
        %v1777 = vshll.u32 %v1703, 16
        %v1779 = vrot.slane %v1777, 2
        %v1780 = vor.u32 %v1776, %v1779
        %v1781 = vsel %vm638, %v1771, %v1780
        %v1783 = vshrl.u32 %v1710, 16
        %v1785 = vrot.slane %v1783, 1
        %v1786 = vshll.u32 %v1710, 16
        %v1788 = vrot.slane %v1786, 2
        %v1789 = vor.u32 %v1785, %v1788
        %v1790 = vsel %vm638, %v1780, %v1789
        %v1793 = vunpack.c.l.b16 %v1660
        %v1794 = vunpack.c.l.b16 %v1661
        %v1795 = vpack.c.b16 %v1680, %v1793
        %v1796 = vpack.c.b16 %v1794, %v1794
        %vm1797 = vcmask 1044480
        %v1798 = vrot.slane %v1795, 3
        %v1799 = vrot.slane %v1697, 3
        %v1800 = vsel %vm1797, %v1798, %v1799
        %v1801 = vrot.slane %v1698, 3
        %v1802 = vsel %vm1797, %v1799, %v1801
        %v1803 = vrot.slane %v1699, 3
        %v1804 = vsel %vm1797, %v1801, %v1803
        %v1805 = vrot.slane %v1700, 3
        %v1806 = vsel %vm1797, %v1803, %v1805
        %v1807 = vrot.slane %v1701, 3
        %v1808 = vsel %vm1797, %v1805, %v1807
        %v1809 = vrot.slane %v1702, 3
        %v1810 = vsel %vm1797, %v1807, %v1809
        %v1811 = vrot.slane %v1703, 3
        %v1812 = vsel %vm1797, %v1809, %v1811
        %v1813 = vrot.slane %v1796, 3
        %v1814 = vsel %vm1797, %v1811, %v1813
        %v1815 = vld [vmem:[#allocation9] sm:$0xf]
        %v1816 = vld [vmem:[#allocation9 + $0x4] sm:$0xf]
        %v1817 = vld [vmem:[#allocation9 + $0x8] sm:$0xf]
        %v1818 = vld [vmem:[#allocation9 + $0xc] sm:$0xf]
        %v1819 = vld [vmem:[#allocation9 + $0x10] sm:$0xf]
        %v1820 = vld [vmem:[#allocation9 + $0x14] sm:$0xf]
        %v1821 = vld [vmem:[#allocation9 + $0x18] sm:$0xf]
        %v1822 = vld [vmem:[#allocation9 + $0x1c] sm:$0xf]
        %v1823 = vld [vmem:[#allocation9 + $0x20] sm:$0xf]
        %v1824 = vld [vmem:[#allocation9 + $0x24] sm:$0xf]
        %v1825 = vld [vmem:[#allocation9 + $0x28] sm:$0xf]
        %v1826 = vld [vmem:[#allocation9 + $0x2c] sm:$0xf]
        %v1827 = vld [vmem:[#allocation9 + $0x30] sm:$0xf]
        %v1828 = vld [vmem:[#allocation9 + $0x34] sm:$0xf]
        %v1829 = vld [vmem:[#allocation9 + $0x38] sm:$0xf]
        %v1830 = vld [vmem:[#allocation9 + $0x3c] sm:$0xf]
        %v1831 = vld [vmem:[#allocation9 + $0x40] sm:$0xf]
        %v1832 = vld [vmem:[#allocation9 + $0x44] sm:$0xf]
        %v1833 = vld [vmem:[#allocation9 + $0x48] sm:$0xf]
        %v1834 = vld [vmem:[#allocation9 + $0x4c] sm:$0xf]
        %v1835 = vld [vmem:[#allocation9 + $0x50] sm:$0xf]
        %v1836 = vld [vmem:[#allocation9 + $0x54] sm:$0xf]
        %v1837 = vld [vmem:[#allocation9 + $0x58] sm:$0xf]
        %v1838 = vld [vmem:[#allocation9 + $0x5c] sm:$0xf]
        %v1839 = vld [vmem:[#allocation9 + $0x60] sm:$0xf]
        %v1840 = vld [vmem:[#allocation9 + $0x64] sm:$0xf]
        %v1841 = vld [vmem:[#allocation9 + $0x68] sm:$0xf]
        %v1842 = vld [vmem:[#allocation9 + $0x6c] sm:$0xf]
        %v1843 = vld [vmem:[#allocation9 + $0x70] sm:$0xf]
        %v1844 = vld [vmem:[#allocation9 + $0x74] sm:$0xf]
        %v1845 = vld [vmem:[#allocation9 + $0x78] sm:$0xf]
        %v1846 = vld [vmem:[#allocation9 + $0x7c] sm:$0xf]
        %v1847 = vld [vmem:[#allocation9 + $0x80] sm:$0xf]
        %v1848 = vld [vmem:[#allocation9 + $0x84] sm:$0xf]
        %v1849 = vld [vmem:[#allocation9 + $0x88] sm:$0xf]
        %v1850 = vld [vmem:[#allocation9 + $0x8c] sm:$0xf]
        %v1851 = vld [vmem:[#allocation9 + $0x90] sm:$0xf]
        %v1852 = vld [vmem:[#allocation9 + $0x94] sm:$0xf]
        %v1853 = vld [vmem:[#allocation9 + $0x98] sm:$0xf]
        %v1854 = vld [vmem:[#allocation9 + $0x9c] sm:$0xf]
        %v1855 = vld [vmem:[#allocation9 + $0xa0] sm:$0xf]
        %v1856 = vld [vmem:[#allocation9 + $0xa4] sm:$0xf]
        %v1857 = vld [vmem:[#allocation9 + $0xa8] sm:$0xf]
        %v1858 = vld [vmem:[#allocation9 + $0xac] sm:$0xf]
        %v1859 = vld [vmem:[#allocation9 + $0xb0] sm:$0xf]
        %v1860 = vld [vmem:[#allocation9 + $0xb4] sm:$0xf]
        %v1861 = vld [vmem:[#allocation9 + $0xb8] sm:$0xf]
        %v1862 = vld [vmem:[#allocation9 + $0xbc] sm:$0xf]
        %v1863 = vld [vmem:[%s4] sm:$0x1]
        %v1865 = vlaneseq
        %v1866 = vshrl.u32 %v1865, 7
        %v1867 = vsub.s32 0, %v1866
        %v1868 = vrot.slane %v1863, %v1867
        %v1871 = vshrl.u32 %v1696, 16
        %v1873 = vshll.u32 %v1696, 16
        %v1875 = vrot.slane %v1873, 1
        %v1876 = vor.u32 %v1871, %v1875
        %v1877 = vrot.slane %v1723, 1
        %v1878 = vsel %vm490, %v1876, %v1877
        %v1880 = vshrl.u32 %v1727, 16
        %v1882 = vshll.u32 %v1727, 16
        %v1884 = vrot.slane %v1882, 1
        %v1885 = vor.u32 %v1880, %v1884
        %v1887 = vshll.u32 %v1736, 16
        %v1889 = vrot.slane %v1887, 1
        %v1890 = vsel %vm490, %v1885, %v1889
        %v1892 = vshrl.u32 %v1800, 16
        %v1894 = vshll.u32 %v1800, 16
        %v1896 = vrot.slane %v1894, 1
        %v1897 = vor.u32 %v1892, %v1896
        %v1899 = vshll.u32 %v1802, 16
        %v1901 = vrot.slane %v1899, 1
        %v1902 = vsel %vm490, %v1897, %v1901
        %v1903 = vor.u32 %v1720, %v1877
        %v1904 = vrot.slane %v1732, 1
        %v1905 = vsel %vm490, %v1903, %v1904
        %v1906 = vshrl.u32 %v1736, 16
        %v1908 = vor.u32 %v1906, %v1889
        %v1910 = vshll.u32 %v1745, 16
        %v1912 = vrot.slane %v1910, 1
        %v1913 = vsel %vm490, %v1908, %v1912
        %v1914 = vshrl.u32 %v1802, 16
        %v1916 = vor.u32 %v1914, %v1901
        %v1918 = vshll.u32 %v1804, 16
        %v1920 = vrot.slane %v1918, 1
        %v1921 = vsel %vm490, %v1916, %v1920
        %v1922 = vor.u32 %v1729, %v1904
        %v1923 = vrot.slane %v1741, 1
        %v1924 = vsel %vm490, %v1922, %v1923
        %v1925 = vshrl.u32 %v1745, 16
        %v1927 = vor.u32 %v1925, %v1912
        %v1929 = vshll.u32 %v1754, 16
        %v1931 = vrot.slane %v1929, 1
        %v1932 = vsel %vm490, %v1927, %v1931
        %v1933 = vshrl.u32 %v1804, 16
        %v1935 = vor.u32 %v1933, %v1920
        %v1937 = vshll.u32 %v1806, 16
        %v1939 = vrot.slane %v1937, 1
        %v1940 = vsel %vm490, %v1935, %v1939
        %v1941 = vor.u32 %v1738, %v1923
        %v1942 = vrot.slane %v1750, 1
        %v1943 = vsel %vm490, %v1941, %v1942
        %v1944 = vshrl.u32 %v1754, 16
        %v1946 = vor.u32 %v1944, %v1931
        %v1948 = vshll.u32 %v1763, 16
        %v1950 = vrot.slane %v1948, 1
        %v1951 = vsel %vm490, %v1946, %v1950
        %v1952 = vshrl.u32 %v1806, 16
        %v1954 = vor.u32 %v1952, %v1939
        %v1956 = vshll.u32 %v1808, 16
        %v1958 = vrot.slane %v1956, 1
        %v1959 = vsel %vm490, %v1954, %v1958
        %v1960 = vor.u32 %v1747, %v1942
        %v1961 = vrot.slane %v1759, 1
        %v1962 = vsel %vm490, %v1960, %v1961
        %v1963 = vshrl.u32 %v1763, 16
        %v1965 = vor.u32 %v1963, %v1950
        %v1967 = vshll.u32 %v1772, 16
        %v1969 = vrot.slane %v1967, 1
        %v1970 = vsel %vm490, %v1965, %v1969
        %v1971 = vshrl.u32 %v1808, 16
        %v1973 = vor.u32 %v1971, %v1958
        %v1975 = vshll.u32 %v1810, 16
        %v1977 = vrot.slane %v1975, 1
        %v1978 = vsel %vm490, %v1973, %v1977
        %v1979 = vor.u32 %v1756, %v1961
        %v1980 = vrot.slane %v1768, 1
        %v1981 = vsel %vm490, %v1979, %v1980
        %v1982 = vshrl.u32 %v1772, 16
        %v1984 = vor.u32 %v1982, %v1969
        %v1986 = vshll.u32 %v1781, 16
        %v1988 = vrot.slane %v1986, 1
        %v1989 = vsel %vm490, %v1984, %v1988
        %v1990 = vshrl.u32 %v1810, 16
        %v1992 = vor.u32 %v1990, %v1977
        %v1994 = vshll.u32 %v1812, 16
        %v1996 = vrot.slane %v1994, 1
        %v1997 = vsel %vm490, %v1992, %v1996
        %v1998 = vor.u32 %v1765, %v1980
        %v1999 = vrot.slane %v1777, 1
        %v2000 = vsel %vm490, %v1998, %v1999
        %v2001 = vshrl.u32 %v1781, 16
        %v2003 = vor.u32 %v2001, %v1988
        %v2005 = vshll.u32 %v1790, 16
        %v2007 = vrot.slane %v2005, 1
        %v2008 = vsel %vm490, %v2003, %v2007
        %v2009 = vshrl.u32 %v1812, 16
        %v2011 = vor.u32 %v2009, %v1996
        %v2013 = vshll.u32 %v1814, 16
        %v2015 = vrot.slane %v2013, 1
        %v2016 = vsel %vm490, %v2011, %v2015
        %v2017 = vor.u32 %v1774, %v1999
        %v2019 = vshll.u32 %v1704, 16
        %v2021 = vrot.slane %v2019, 1
        %v2022 = vsel %vm490, %v2017, %v2021
        %v2023 = vshrl.u32 %v1790, 16
        %v2025 = vor.u32 %v2023, %v2007
        %v2027 = vshll.u32 %v1785, 16
        %v2029 = vrot.slane %v2027, 1
        %v2030 = vsel %vm490, %v2025, %v2029
        %v2031 = vshrl.u32 %v1814, 16
        %v2033 = vor.u32 %v2031, %v2015
        %v2035 = vshll.u32 %v1813, 16
        %v2037 = vrot.slane %v2035, 1
        %v2038 = vsel %vm490, %v2033, %v2037
        %v2111 = vunpack.c.l.b16 %v1815
        %v2112 = vunpack.c.l.b16 %v1816
        %v2113 = vunpack.c.l.b16 %v1817
        %v2114 = vunpack.c.l.b16 %v1818
        %v2115 = vunpack.c.l.b16 %v1819
        %v2116 = vunpack.c.l.b16 %v1820
        %v2117 = vunpack.c.l.b16 %v1821
        %v2118 = vunpack.c.l.b16 %v1822
        %v2119 = vunpack.c.l.b16 %v1823
        %v2120 = vunpack.c.l.b16 %v1824
        %v2121 = vunpack.c.l.b16 %v1825
        %v2122 = vunpack.c.l.b16 %v1826
        %v2123 = vunpack.c.l.b16 %v1827
        %v2124 = vunpack.c.l.b16 %v1828
        %v2125 = vunpack.c.l.b16 %v1829
        %v2126 = vunpack.c.l.b16 %v1830
        %v2127 = vunpack.c.l.b16 %v1831
        %v2128 = vunpack.c.l.b16 %v1832
        %v2129 = vunpack.c.l.b16 %v1833
        %v2130 = vunpack.c.l.b16 %v1834
        %v2131 = vunpack.c.l.b16 %v1835
        %v2132 = vunpack.c.l.b16 %v1836
        %v2133 = vunpack.c.l.b16 %v1837
        %v2134 = vunpack.c.l.b16 %v1838
        %v2135 = vunpack.c.l.b16 %v1839
        %v2136 = vunpack.c.l.b16 %v1840
        %v2137 = vunpack.c.l.b16 %v1841
        %v2138 = vunpack.c.l.b16 %v1842
        %v2139 = vunpack.c.l.b16 %v1843
        %v2140 = vunpack.c.l.b16 %v1844
        %v2141 = vunpack.c.l.b16 %v1845
        %v2142 = vunpack.c.l.b16 %v1846
        %v2143 = vunpack.c.l.b16 %v1847
        %v2144 = vunpack.c.l.b16 %v1848
        %v2145 = vunpack.c.l.b16 %v1849
        %v2146 = vunpack.c.l.b16 %v1850
        %v2147 = vunpack.c.l.b16 %v1851
        %v2148 = vunpack.c.l.b16 %v1852
        %v2149 = vunpack.c.l.b16 %v1853
        %v2150 = vunpack.c.l.b16 %v1854
        %v2151 = vunpack.c.l.b16 %v1855
        %v2152 = vunpack.c.l.b16 %v1856
        %v2153 = vunpack.c.l.b16 %v1857
        %v2154 = vunpack.c.l.b16 %v1858
        %v2155 = vunpack.c.l.b16 %v1859
        %v2156 = vunpack.c.l.b16 %v1860
        %v2157 = vunpack.c.l.b16 %v1861
        %v2158 = vunpack.c.l.b16 %v1862
        %v2159 = vpack.c.b16 %v2112, %v2111
        %v2160 = vpack.c.b16 %v2114, %v2113
        %v2161 = vpack.c.b16 %v2116, %v2115
        %v2162 = vpack.c.b16 %v2118, %v2117
        %v2163 = vpack.c.b16 %v2120, %v2119
        %v2164 = vpack.c.b16 %v2122, %v2121
        %v2165 = vpack.c.b16 %v2124, %v2123
        %v2166 = vpack.c.b16 %v2126, %v2125
        %v2167 = vpack.c.b16 %v2128, %v2127
        %v2168 = vpack.c.b16 %v2130, %v2129
        %v2169 = vpack.c.b16 %v2132, %v2131
        %v2170 = vpack.c.b16 %v2134, %v2133
        %v2171 = vpack.c.b16 %v2136, %v2135
        %v2172 = vpack.c.b16 %v2138, %v2137
        %v2173 = vpack.c.b16 %v2140, %v2139
        %v2174 = vpack.c.b16 %v2142, %v2141
        %v2175 = vpack.c.b16 %v2144, %v2143
        %v2176 = vpack.c.b16 %v2146, %v2145
        %v2177 = vpack.c.b16 %v2148, %v2147
        %v2178 = vpack.c.b16 %v2150, %v2149
        %v2179 = vpack.c.b16 %v2152, %v2151
        %v2180 = vpack.c.b16 %v2154, %v2153
        %v2181 = vpack.c.b16 %v2156, %v2155
        %v2182 = vpack.c.b16 %v2158, %v2157
        %2207 = vmatprep.subr.bf16.mxu0 0
        %2208 = vmatpush1.bf16.msra.mxu0 %v2166
        %2209 = vmatprep.subr.bf16.mxu0 0
        %2210 = vmatpush1.bf16.msra.mxu0 %v2165
        %2211 = vmatprep.subr.bf16.mxu0 0
        %2212 = vmatpush1.bf16.msra.mxu0 %v2164
        %2213 = vmatprep.subr.bf16.mxu0 0
        %2214 = vmatpush1.bf16.msra.mxu0 %v2163
        %2215 = vmatprep.subr.bf16.mxu0 0
        %2216 = vmatpush1.bf16.msra.mxu0 %v2162
        %2217 = vmatprep.subr.bf16.mxu0 0
        %2218 = vmatpush1.bf16.msra.mxu0 %v2161
        %2219 = vmatprep.subr.bf16.mxu0 0
        %2220 = vmatpush1.bf16.msra.mxu0 %v2160
        %2221 = vmatprep.subr.bf16.mxu0 0
        %2222 = vmatpush1.bf16.msra.mxu0 %v2159
        %2223 = vmatprep.subr.bf16.mxu0 0
        %2224 = vmatpush2.bf16.msra.mxu0 %v2174
        %2225 = vmatprep.subr.bf16.mxu0 0
        %2226 = vmatpush2.bf16.msra.mxu0 %v2173
        %2227 = vmatprep.subr.bf16.mxu0 0
        %2228 = vmatpush2.bf16.msra.mxu0 %v2172
        %2229 = vmatprep.subr.bf16.mxu0 0
        %2230 = vmatpush2.bf16.msra.mxu0 %v2171
        %2231 = vmatprep.subr.bf16.mxu0 0
        %2232 = vmatpush2.bf16.msra.mxu0 %v2170
        %2233 = vmatprep.subr.bf16.mxu0 0
        %2234 = vmatpush2.bf16.msra.mxu0 %v2169
        %2235 = vmatprep.subr.bf16.mxu0 0
        %2236 = vmatpush2.bf16.msra.mxu0 %v2168
        %2237 = vmatprep.subr.bf16.mxu0 0
        %2238 = vmatpush2.bf16.msra.mxu0 %v2167
        %2239 = vmatprep.mubr.bf16.mxu0 %v1890
        %2240 = vmatmul.mubr.bf16.gmra.mxu0 %v1878
        %v2241 = vpop.f32.mrf.mxu0
        %v2242 = vadd.f32 %v1868, %v2241
        %v2243 = vpop.f32.mrf.mxu0
        %v2244 = vpop.f32.mrf.mxu0
        %v2245 = vadd.f32 %v1868, %v2244
        %v2246 = vpop.f32.mrf.mxu0
        %2247 = vmatprep.mubr.bf16.mxu0 %v1913
        %2248 = vmatmul.mubr.bf16.gmra.mxu0 %v1905
        %v2249 = vpop.f32.mrf.mxu0
        %v2250 = vadd.f32 %v1868, %v2249
        %v2251 = vpop.f32.mrf.mxu0
        %v2252 = vpop.f32.mrf.mxu0
        %v2253 = vadd.f32 %v1868, %v2252
        %v2254 = vpop.f32.mrf.mxu0
        %2255 = vmatprep.mubr.bf16.mxu0 %v1932
        %2256 = vmatmul.mubr.bf16.gmra.mxu0 %v1924
        %v2257 = vpop.f32.mrf.mxu0
        %v2258 = vadd.f32 %v1868, %v2257
        %v2259 = vpop.f32.mrf.mxu0
        %v2260 = vpop.f32.mrf.mxu0
        %v2261 = vadd.f32 %v1868, %v2260
        %v2262 = vpop.f32.mrf.mxu0
        %2263 = vmatprep.mubr.bf16.mxu0 %v1951
        %2264 = vmatmul.mubr.bf16.gmra.mxu0 %v1943
        %v2265 = vpop.f32.mrf.mxu0
        %v2266 = vadd.f32 %v1868, %v2265
        %v2267 = vpop.f32.mrf.mxu0
        %v2268 = vpop.f32.mrf.mxu0
        %v2269 = vadd.f32 %v1868, %v2268
        %v2270 = vpop.f32.mrf.mxu0
        %2271 = vmatprep.mubr.bf16.mxu0 %v1970
        %2272 = vmatmul.mubr.bf16.gmra.mxu0 %v1962
        %v2273 = vpop.f32.mrf.mxu0
        %v2274 = vadd.f32 %v1868, %v2273
        %v2275 = vpop.f32.mrf.mxu0
        %v2276 = vpop.f32.mrf.mxu0
        %v2277 = vadd.f32 %v1868, %v2276
        %v2278 = vpop.f32.mrf.mxu0
        %2279 = vmatprep.mubr.bf16.mxu0 %v1989
        %2280 = vmatmul.mubr.bf16.gmra.mxu0 %v1981
        %v2281 = vpop.f32.mrf.mxu0
        %v2282 = vadd.f32 %v1868, %v2281
        %v2283 = vpop.f32.mrf.mxu0
        %v2284 = vpop.f32.mrf.mxu0
        %v2285 = vadd.f32 %v1868, %v2284
        %v2286 = vpop.f32.mrf.mxu0
        %2287 = vmatprep.mubr.bf16.mxu0 %v2008
        %2288 = vmatmul.mubr.bf16.gmra.mxu0 %v2000
        %v2289 = vpop.f32.mrf.mxu0
        %v2290 = vadd.f32 %v1868, %v2289
        %v2291 = vpop.f32.mrf.mxu0
        %v2292 = vpop.f32.mrf.mxu0
        %v2293 = vadd.f32 %v1868, %v2292
        %v2294 = vpop.f32.mrf.mxu0
        %2295 = vmatprep.mubr.bf16.mxu0 %v2030
        %2296 = vmatmul.mubr.bf16.gmra.mxu0 %v2022
        %v2297 = vpop.f32.mrf.mxu0
        %v2298 = vadd.f32 %v1868, %v2297
        %v2299 = vpop.f32.mrf.mxu0
        %v2300 = vpop.f32.mrf.mxu0
        %v2301 = vadd.f32 %v1868, %v2300
        %v2302 = vpop.f32.mrf.mxu0
        %2303 = vdwg.mxu0
        %2304 = vmatprep.subr.bf16.mxu0 0
        %2305 = vmatpush1.bf16.msra.mxu0 %v2182
        %2306 = vmatprep.subr.bf16.mxu0 0
        %2307 = vmatpush1.bf16.msra.mxu0 %v2181
        %2308 = vmatprep.subr.bf16.mxu0 0
        %2309 = vmatpush1.bf16.msra.mxu0 %v2180
        %2310 = vmatprep.subr.bf16.mxu0 0
        %2311 = vmatpush1.bf16.msra.mxu0 %v2179
        %2312 = vmatprep.subr.bf16.mxu0 0
        %2313 = vmatpush1.bf16.msra.mxu0 %v2178
        %2314 = vmatprep.subr.bf16.mxu0 0
        %2315 = vmatpush1.bf16.msra.mxu0 %v2177
        %2316 = vmatprep.subr.bf16.mxu0 0
        %2317 = vmatpush1.bf16.msra.mxu0 %v2176
        %2318 = vmatprep.subr.bf16.mxu0 0
        %2319 = vmatpush1.bf16.msra.mxu0 %v2175
        %2320 = vmatprep.subr.bf16.mxu0 0
        %2321 = vmatpush2.bf16.msra.mxu0 0
        %2322 = vmatprep.subr.bf16.mxu0 0
        %2323 = vmatpush2.bf16.msra.mxu0 0
        %2324 = vmatprep.subr.bf16.mxu0 0
        %2325 = vmatpush2.bf16.msra.mxu0 0
        %2326 = vmatprep.subr.bf16.mxu0 0
        %2327 = vmatpush2.bf16.msra.mxu0 0
        %2328 = vmatprep.subr.bf16.mxu0 0
        %2329 = vmatpush2.bf16.msra.mxu0 0
        %2330 = vmatprep.subr.bf16.mxu0 0
        %2331 = vmatpush2.bf16.msra.mxu0 0
        %2332 = vmatprep.subr.bf16.mxu0 0
        %2333 = vmatpush2.bf16.msra.mxu0 0
        %2334 = vmatprep.subr.bf16.mxu0 0
        %2335 = vmatpush2.bf16.msra.mxu0 0
        %2336 = vmatprep.mubr.bf16.mxu0 0
        %2337 = vmatmul.mubr.bf16.gmra.mxu0 %v1902
        %v2338 = vpop.f32.mrf.mxu0
        %v2339 = vadd.f32 %v2242, %v2338
        %v2340 = vpop.f32.mrf.mxu0
        %v2341 = vpop.f32.mrf.mxu0
        %v2342 = vadd.f32 %v2245, %v2341
        %v2343 = vpop.f32.mrf.mxu0
        %2344 = vmatprep.mubr.bf16.mxu0 0
        %2345 = vmatmul.mubr.bf16.gmra.mxu0 %v1921
        %v2346 = vpop.f32.mrf.mxu0
        %v2347 = vadd.f32 %v2250, %v2346
        %v2348 = vpop.f32.mrf.mxu0
        %v2349 = vpop.f32.mrf.mxu0
        %v2350 = vadd.f32 %v2253, %v2349
        %v2351 = vpop.f32.mrf.mxu0
        %2352 = vmatprep.mubr.bf16.mxu0 0
        %2353 = vmatmul.mubr.bf16.gmra.mxu0 %v1940
        %v2354 = vpop.f32.mrf.mxu0
        %v2355 = vadd.f32 %v2258, %v2354
        %v2356 = vpop.f32.mrf.mxu0
        %v2357 = vpop.f32.mrf.mxu0
        %v2358 = vadd.f32 %v2261, %v2357
        %v2359 = vpop.f32.mrf.mxu0
        %2360 = vmatprep.mubr.bf16.mxu0 0
        %2361 = vmatmul.mubr.bf16.gmra.mxu0 %v1959
        %v2362 = vpop.f32.mrf.mxu0
        %v2363 = vadd.f32 %v2266, %v2362
        %v2364 = vpop.f32.mrf.mxu0
        %v2365 = vpop.f32.mrf.mxu0
        %v2366 = vadd.f32 %v2269, %v2365
        %v2367 = vpop.f32.mrf.mxu0
        %2368 = vmatprep.mubr.bf16.mxu0 0
        %2369 = vmatmul.mubr.bf16.gmra.mxu0 %v1978
        %v2370 = vpop.f32.mrf.mxu0
        %v2371 = vadd.f32 %v2274, %v2370
        %v2372 = vpop.f32.mrf.mxu0
        %v2373 = vpop.f32.mrf.mxu0
        %v2374 = vadd.f32 %v2277, %v2373
        %v2375 = vpop.f32.mrf.mxu0
        %2376 = vmatprep.mubr.bf16.mxu0 0
        %2377 = vmatmul.mubr.bf16.gmra.mxu0 %v1997
        %v2378 = vpop.f32.mrf.mxu0
        %v2379 = vadd.f32 %v2282, %v2378
        %v2380 = vpop.f32.mrf.mxu0
        %v2381 = vpop.f32.mrf.mxu0
        %v2382 = vadd.f32 %v2285, %v2381
        %v2383 = vpop.f32.mrf.mxu0
        %2384 = vmatprep.mubr.bf16.mxu0 0
        %2385 = vmatmul.mubr.bf16.gmra.mxu0 %v2016
        %v2386 = vpop.f32.mrf.mxu0
        %v2387 = vadd.f32 %v2290, %v2386
        %v2388 = vpop.f32.mrf.mxu0
        %v2389 = vpop.f32.mrf.mxu0
        %v2390 = vadd.f32 %v2293, %v2389
        %v2391 = vpop.f32.mrf.mxu0
        %2392 = vmatprep.mubr.bf16.mxu0 0
        %2393 = vmatmul.mubr.bf16.gmra.mxu0 %v2038
        %v2394 = vpop.f32.mrf.mxu0
        %v2395 = vadd.f32 %v2298, %v2394
        %v2396 = vpop.f32.mrf.mxu0
        %v2397 = vpop.f32.mrf.mxu0
        %v2398 = vadd.f32 %v2301, %v2397
        %v2399 = vpop.f32.mrf.mxu0
        %2400 = vdwg.mxu0
        %v2401 = vld [vmem:[#allocation5 + $0x4] sm:$0xff]
        %v2402 = vld [vmem:[#allocation5 + $0xc] sm:$0xff]
        %v2403 = vld [vmem:[#allocation5 + $0x14] sm:$0xff]
        %v2404 = vld [vmem:[#allocation5 + $0x1c] sm:$0xff]
        %v2405 = vld [vmem:[#allocation5 + $0x24] sm:$0xff]
        %v2406 = vld [vmem:[#allocation5 + $0x2c] sm:$0xff]
        %v2407 = vld [vmem:[#allocation5 + $0x34] sm:$0xff]
        %v2408 = vld [vmem:[#allocation5 + $0x3c] sm:$0xff]
        %v2409 = vld [vmem:[#allocation5 + $0x44] sm:$0xff]
        %v2410 = vld [vmem:[#allocation5 + $0x4c] sm:$0xff]
        %v2411 = vld [vmem:[#allocation5 + $0x54] sm:$0xff]
        %v2412 = vld [vmem:[#allocation5 + $0x5c] sm:$0xff]
        %v2413 = vld [vmem:[#allocation5 + $0x64] sm:$0xff]
        %v2414 = vld [vmem:[#allocation5 + $0x6c] sm:$0xff]
        %v2415 = vld [vmem:[#allocation5 + $0x74] sm:$0xff]
        %v2416 = vld [vmem:[#allocation5 + $0x7c] sm:$0xff]
        %v2417 = vadd.f32 %v2339, %v2401
        %v2418 = vadd.f32 %v2342, %v2402
        %v2419 = vadd.f32 %v2347, %v2403
        %v2420 = vadd.f32 %v2350, %v2404
        %v2421 = vadd.f32 %v2355, %v2405
        %v2422 = vadd.f32 %v2358, %v2406
        %v2423 = vadd.f32 %v2363, %v2407
        %v2424 = vadd.f32 %v2366, %v2408
        %v2425 = vadd.f32 %v2371, %v2409
        %v2426 = vadd.f32 %v2374, %v2410
        %v2427 = vadd.f32 %v2379, %v2411
        %v2428 = vadd.f32 %v2382, %v2412
        %v2429 = vadd.f32 %v2387, %v2413
        %v2430 = vadd.f32 %v2390, %v2414
        %v2431 = vadd.f32 %v2395, %v2415
        %v2432 = vadd.f32 %v2398, %v2416
        %2433 = vst [vmem:[%s220] sm:$0xff] %v2417
        %2434 = vst [vmem:[%s220 + $0x8] sm:$0xff] %v2418
        %2435 = vst [vmem:[%s220 + $0x10] sm:$0xff] %v2419
        %2436 = vst [vmem:[%s220 + $0x18] sm:$0xff] %v2420
        %2437 = vst [vmem:[%s220 + $0x20] sm:$0xff] %v2421
        %2438 = vst [vmem:[%s220 + $0x28] sm:$0xff] %v2422
        %2439 = vst [vmem:[%s220 + $0x30] sm:$0xff] %v2423
        %2440 = vst [vmem:[%s220 + $0x38] sm:$0xff] %v2424
        %2441 = vst [vmem:[%s220 + $0x40] sm:$0xff] %v2425
        %2442 = vst [vmem:[%s220 + $0x48] sm:$0xff] %v2426
        %2443 = vst [vmem:[%s220 + $0x50] sm:$0xff] %v2427
        %2444 = vst [vmem:[%s220 + $0x58] sm:$0xff] %v2428
        %2445 = vst [vmem:[%s220 + $0x60] sm:$0xff] %v2429
        %2446 = vst [vmem:[%s220 + $0x68] sm:$0xff] %v2430
        %2447 = vst [vmem:[%s220 + $0x70] sm:$0xff] %v2431
        %2448 = vst [vmem:[%s220 + $0x78] sm:$0xff] %v2432
        %s2449 = sand.u32 %s127, 1
        %s2450 = scalar_lea.sflag [#allocation8], %s2449
        %s2451 = sand.u32 %s127, 1
        %s2452 = smul.addr %s2451, 128
        %s2453 = scalar_lea.vmem [#allocation11], %s2452
        // Predicated region
        $region65: #{tpu_custom_call.1} parent=35 // pred_check
          %p2454 = pneg %p137
        $region66: #{tpu_custom_call.1} parent=35 // pred_check_branch
          %2456 = sbr.rel (%p2454) target = $region68
        $region67: #{tpu_custom_call.1} parent=35 // pred_region
          %s2457 = smul.u32 16, %s26
          %s2459 = ssub.s32 2048, 2048
          %2460 = vsyncadd %s2450, %s2459
          %s2461 = smul.addr %s25, 32
          %s2462 = sadd.s32 %s2457, %s2461
          %s2463 = smul.addr %s2462, 128
          %s2464 = scalar_lea.hbm %s5, %s2463
          %s2465 = sshll.u32 %s2453, 4
          %s2466 = int_to_ptr.vmem [resolvable:$true] %s2465
          %2471 = dma.vmem_to_hbm [thread:$0]  %s2466, 2048, %s2464, %s2450, 128, 128, 8
        $region68: #{tpu_custom_call.1} parent=35 // pred_fallthru
          _
      $region36: #{tpu_custom_call.1} parent=5 // pred_fallthru
        _
      %p2472 = scmp.le.s32.totalorder 2, %s16
      // Predicated region
      $region69: #{tpu_custom_call.1} parent=5 // pred_check
        %p2473 = pneg %p2472
      $region70: #{tpu_custom_call.1} parent=5 // pred_check_branch
        %2475 = sbr.rel (%p2473) target = $region72
      $region71: #{tpu_custom_call.1} parent=5 // pred_region
        %s2476 = ssub.s32 %s16, 2
        // Predicated region
        $region73: #{tpu_custom_call.1} parent=71 // pred_check
          %p2477 = pneg %p143
        $region74: #{tpu_custom_call.1} parent=71 // pred_check_branch
          %2479 = sbr.rel (%p2477) target = $region76
        $region75: #{tpu_custom_call.1} parent=71 // pred_region
          %s2480 = sand.u32 %s128, 1
          %s2481 = scalar_lea.sflag [#allocation8], %s2480
          %s2482 = sand.u32 %s128, 1
          %s2483 = smul.addr %s2482, 128
          %s2484 = scalar_lea.vmem [#allocation11], %s2483
          %2485 = dma.done %s2481, 2048
        $region76: #{tpu_custom_call.1} parent=71 // pred_fallthru
          _
      $region72: #{tpu_custom_call.1} parent=5 // pred_fallthru
        _
    $region6: #{tpu_custom_call.1} parent=1 // loop_footer
      %s20 = sadd.s32 1, %s16
    $region7: #{tpu_custom_call.1} parent=1 // loop_footer_branch
      %15 = sbr.rel target = $region3
    $region8: #{tpu_custom_call.1} parent=1 // loop_exit
      _
    %2486 = vsyncpa [#allocation7], 1
    %s2487 = scalar_lea.sflag [#allocation7], 1
    %2488 = vsyncpa %s2487, 1
    %2489 = vsyncpa [#allocation10], 1
    %2490 = vsyncpa [#allocation8], 1
    %s2491 = scalar_lea.sflag [#allocation8], 1
    %2492 = vsyncpa %s2491, 1
  %2493 = vsyncmov [#allocation3]
  %s2494 = vpop.sfrf %2493
  %p2495 = scmp.eq.s32.totalorder %s2494, 0
  %p2496 = pneg %p2495
  %2498 = shalt.err (%p2496)
  %s2499 = scalar_lea.sflag [#allocation3], 1
  %2500 = vsyncmov %s2499
  %s2501 = vpop.sfrf %2500
  %p2502 = scmp.eq.s32.totalorder %s2501, 0
  %p2503 = pneg %p2502
  %2505 = shalt.err (%p2503)

</llo_original>
